<compile_context>
chip_gen: v7x
topology: tpu7x:2x2x1
jax: 0.10.0
libtpu: 0.0.40
codegen_flags: <defaults>
</compile_context>

<pallas_src>
import functools

import jax
import jax.numpy as jnp
from jax.experimental import pallas as pl
from jax.experimental.pallas import tpu as pltpu


def _round_up(x, m):
    return ((x + m - 1) // m) * m


def _conv_bn_relu_kernel(x_ref, w_ref, b_ref, o_ref, *, tm, wp, n_kh, n_kw, twin):
    """Direct conv + folded-BN bias + ReLU for one (image, row-block) grid step.

    x_ref: (Lp, C)         bf16  flattened, spatially padded image (full image, resident)
    w_ref: (KH*KW, C, OCp) bf16  per-tap weights, BN scale pre-folded
    b_ref: (1, OCp)        f32   folded conv/BN bias
    o_ref: (TM, OCp)             rows [m0, m0+TM) of the flattened output
    """
    m0 = pl.multiple_of(pl.program_id(1) * tm, 8)
    # One aligned dynamic load of block + halo; per-tap shifts below are static slices
    # of this in-VMEM value (no unaligned dynamic ref slicing).
    xw = x_ref[pl.ds(m0, twin), :]                              # (twin, C) bf16
    ocp = o_ref.shape[-1]
    acc = jnp.zeros((tm, ocp), jnp.float32)
    for r in range(n_kh):
        for c in range(n_kw):
            off = r * wp + c                                    # static tap offset
            xs = xw[off:off + tm, :]                            # (TM, C) bf16
            acc = acc + jnp.dot(xs, w_ref[r * n_kw + c],
                                preferred_element_type=jnp.float32)
    y = acc + b_ref[...]                                        # broadcast bias add
    o_ref[...] = jnp.maximum(y, 0.0).astype(o_ref.dtype)


def basic_conv2d(x_nchw, weight, conv_bias, gamma, beta, running_mean,
                 running_var, *, padding=0, eps=1e-3, tile_m=512,
                 out_dtype=jnp.float32):
    """Conv2d(stride=1, padding=padding) + BatchNorm2d(eval, eps) + ReLU.

    x_nchw: (N, C, H, W); weight: (OC, C, KH, KW).  Returns (N, OC, OH, OW).
    """
    N, C, H, W = x_nchw.shape
    OC, IC, KH, KW = weight.shape
    assert IC == C
    Hp, Wp = H + 2 * padding, W + 2 * padding
    OH, OW = Hp - KH + 1, Wp - KW + 1
    assert OH > 0 and OW > 0

    OCp = _round_up(OC, 128)     # lane-dense output / full MXU N dimension
    T = KH * KW

    # ---- fold BN (eval mode) into the conv: scale -> weights, bias separate ----
    inv_std = jax.lax.rsqrt(running_var.astype(jnp.float32) + eps)
    scale = gamma.astype(jnp.float32) * inv_std                          # (OC,)
    bias = ((conv_bias.astype(jnp.float32) - running_mean.astype(jnp.float32))
            * scale + beta.astype(jnp.float32))                          # (OC,)

    # weight (OC, C, KH, KW) -> (KH, KW, C, OC), fold scale, bf16, pad OC -> OCp
    w = jnp.transpose(weight.astype(jnp.float32), (2, 3, 1, 0)) * scale  # (KH,KW,C,OC)
    w = w.reshape(T, C, OC).astype(jnp.bfloat16)
    w = jnp.pad(w, ((0, 0), (0, 0), (0, OCp - OC)))
    b = jnp.pad(bias, (0, OCp - OC)).reshape(1, OCp)

    # ---- glue: NCHW -> NHWC, spatial pad, flatten spatial, bf16 ----
    x = jnp.transpose(x_nchw, (0, 2, 3, 1)).astype(jnp.bfloat16)
    x = jnp.pad(x, ((0, 0), (padding, padding), (padding, padding), (0, 0)))
    x = x.reshape(N, Hp * Wp, C)

    # Flattened-spatial direct conv: output row p = oh*Wp + ow for ow in [0, Wp);
    # columns ow >= OW are wrap-around garbage and get sliced off afterwards.
    M_out = OH * Wp
    halo = (KH - 1) * Wp + (KW - 1)

    # Pick the largest M tile that fits a conservative per-step VMEM budget
    # (safe on v7x's 64 MiB VMEM as well as v5e/v6e's 128 MiB).
    def _vmem_est(tm_):
        lp_ = pl.cdiv(M_out, tm_) * tm_ + halo
        return (2 * lp_ * C * 2                  # input image (double-buffered)
                + 2 * T * C * OCp * 2            # weights (resident, double-buffered)
                + 2 * tm_ * OCp * 4              # output block (double-buffered)
                + 3 * tm_ * OCp * 4              # f32 accumulator + matmul temp
                + 2 * (tm_ + halo) * C * 2       # in-kernel halo window value
                + 2 * tm_ * C * 2)               # per-tap slice temp

    TM = min(_round_up(tile_m, 8), _round_up(M_out, 8))
    budget = 24 * 2 ** 20
    while _vmem_est(TM) > budget and TM > 64:
        TM = max(64, _round_up(TM // 2, 8))
    # TODO(synk): if a single flattened image exceeds VMEM (very large spatial*channels),
    #             a spatially-tiled variant with manual halo DMA is required.

    grid_m = pl.cdiv(M_out, TM)
    M_pad = grid_m * TM
    TWIN = TM + halo
    Lp = M_pad + halo
    x = jnp.pad(x, ((0, 0), (0, Lp - Hp * Wp), (0, 0)))   # tiny halo/tail pad only

    vmem_limit = int(min(48 * 2 ** 20, max(32 * 2 ** 20, 2 * _vmem_est(TM))))

    kernel = functools.partial(_conv_bn_relu_kernel, tm=TM, wp=Wp,
                               n_kh=KH, n_kw=KW, twin=TWIN)
    out = pl.pallas_call(
        kernel,
        out_shape=jax.ShapeDtypeStruct((N, M_pad, OCp), out_dtype),
        grid_spec=pltpu.PrefetchScalarGridSpec(
            num_scalar_prefetch=0,
            grid=(N, grid_m),
            in_specs=[
                pl.BlockSpec((None, Lp, C), lambda n, m: (n, 0, 0)),   # image, resident per n
                pl.BlockSpec((T, C, OCp), lambda n, m: (0, 0, 0)),     # weights, resident
                pl.BlockSpec((1, OCp), lambda n, m: (0, 0)),           # folded bias
            ],
            out_specs=pl.BlockSpec((None, TM, OCp), lambda n, m: (n, m, 0)),
        ),
        compiler_params=pltpu.CompilerParams(
            dimension_semantics=("parallel", "parallel"),
            vmem_limit_bytes=vmem_limit),
    )(x, w, b)

    out = out[:, :M_out, :OC].reshape(N, OH, Wp, OC)[:, :, :OW, :]
    return jnp.transpose(out, (0, 3, 1, 2))               # back to NCHW


def _reference(x_nchw, weight, conv_bias, gamma, beta, running_mean,
               running_var, *, padding, eps=1e-3):
    """Pure-JAX reference with the kernel's numerics: BN scale folded into the weights,
    inputs/weights rounded to bf16, accumulation in f32."""
    inv_std = jax.lax.rsqrt(running_var.astype(jnp.float32) + eps)
    scale = gamma.astype(jnp.float32) * inv_std
    w_eff = (weight.astype(jnp.float32) * scale[:, None, None, None]
             ).astype(jnp.bfloat16).astype(jnp.float32)
    b_eff = ((conv_bias.astype(jnp.float32) - running_mean.astype(jnp.float32))
             * scale + beta.astype(jnp.float32))
    xb = x_nchw.astype(jnp.bfloat16).astype(jnp.float32)
    y = jax.lax.conv_general_dilated(
        xb, w_eff, window_strides=(1, 1),
        padding=[(padding, padding), (padding, padding)],
        dimension_numbers=("NCHW", "OIHW", "NCHW"),
        precision=jax.lax.Precision.HIGHEST)
    y = y + b_eff.reshape(1, -1, 1, 1)
    return jnp.maximum(y, 0.0)


if __name__ == "__main__":
    key = jax.random.PRNGKey(0)
    N, C, H, W = 2, 4, 16, 16
    OC, KH, KW, PAD = 8, 3, 3, 1

    k1, k2, k3, k4, k5, k6, k7 = jax.random.split(key, 7)
    x = jax.random.normal(k1, (N, C, H, W), jnp.float32)
    weight = jax.random.normal(k2, (OC, C, KH, KW), jnp.float32) * 0.1
    conv_bias = jax.random.normal(k3, (OC,), jnp.float32) * 0.1
    gamma = 1.0 + 0.1 * jax.random.normal(k4, (OC,), jnp.float32)
    beta = 0.1 * jax.random.normal(k5, (OC,), jnp.float32)
    running_mean = 0.1 * jax.random.normal(k6, (OC,), jnp.float32)
    running_var = jnp.abs(jax.random.normal(k7, (OC,), jnp.float32)) + 0.5

    fn = jax.jit(functools.partial(basic_conv2d, padding=PAD, eps=1e-3))
    out = jax.block_until_ready(
        fn(x, weight, conv_bias, gamma, beta, running_mean, running_var))

    ref = _reference(x, weight, conv_bias, gamma, beta, running_mean,
                     running_var, padding=PAD)
    assert out.shape == (N, OC, H, W), out.shape
    max_err = float(jnp.max(jnp.abs(out - ref)))
    assert jnp.allclose(out, ref, atol=1e-3, rtol=1e-3), max_err
    print("KERNEL_OK")
</pallas_src>

<mosaic_0001>
module attributes {stable_mosaic.version = 11 : i64} {
  func.func @_conv_bn_relu_kernel(%arg0: i32, %arg1: i32, %arg2: memref<1x326x4xbf16, #tpu.memory_space<vmem>>, %arg3: memref<9x4x128xbf16, #tpu.memory_space<vmem>>, %arg4: memref<1x128xf32, #tpu.memory_space<vmem>>, %arg5: memref<1x288x128xf32, #tpu.memory_space<vmem>>) attributes {dimension_semantics = [#tpu.dimension_semantics<parallel>, #tpu.dimension_semantics<parallel>], iteration_bounds = array<i64: 2, 1>, scalar_prefetch = 0 : i64, scratch_operands = 0 : i64, tpu.core_type = #tpu.core_type<tc>, window_params = [{transform_indices = @transform_0, window_bounds = array<i64: 1, 326, 4>}, {pipeline_mode = #tpu.pipeline_mode<synchronous>, transform_indices = @transform_1, window_bounds = array<i64: 9, 4, 128>}, {pipeline_mode = #tpu.pipeline_mode<synchronous>, transform_indices = @transform_2, window_bounds = array<i64: 1, 128>}, {transform_indices = @transform_3, window_bounds = array<i64: 1, 288, 128>}]} {
    %c288_i32 = arith.constant 288 : i32
    %0 = arith.muli %arg1, %c288_i32 : i32
    %1 = tpu.assume_multiple %0, 8 : i32
    %c0 = arith.constant 0 : index
    %2 = arith.index_cast %1 : i32 to index
    %c0_0 = arith.constant 0 : index
    %3 = vector.load %arg2[%c0, %2, %c0_0] : memref<1x326x4xbf16, #tpu.memory_space<vmem>>, vector<1x326x4xbf16>
    %4 = vector.shape_cast %3 : vector<1x326x4xbf16> to vector<326x4xbf16>
    %cst = arith.constant 0.000000e+00 : f32
    %5 = vector.broadcast %cst : f32 to vector<288x128xf32>
    %6 = vector.extract_strided_slice %4 {offsets = [0, 0], sizes = [288, 4], strides = [1, 1]} : vector<326x4xbf16> to vector<288x4xbf16>
    %c0_1 = arith.constant 0 : index
    %c0_2 = arith.constant 0 : index
    %c0_3 = arith.constant 0 : index
    %7 = vector.load %arg3[%c0_1, %c0_2, %c0_3] : memref<9x4x128xbf16, #tpu.memory_space<vmem>>, vector<1x4x128xbf16>
    %8 = vector.shape_cast %7 : vector<1x4x128xbf16> to vector<4x128xbf16>
    %cst_4 = arith.constant dense<0.000000e+00> : vector<288x128xf32>
    %9 = tpu.matmul %6, %8, %cst_4 {dimension_numbers = #tpu.dot_dimension_numbers<[1], [0], [0], [1], [0, 0, 1, 1], [], []>} : vector<288x4xbf16>, vector<4x128xbf16>, vector<288x128xf32> -> vector<288x128xf32>
    %10 = arith.addf %5, %9 : vector<288x128xf32>
    %11 = vector.extract_strided_slice %4 {offsets = [1, 0], sizes = [288, 4], strides = [1, 1]} : vector<326x4xbf16> to vector<288x4xbf16>
    %c1 = arith.constant 1 : index
    %c0_5 = arith.constant 0 : index
    %c0_6 = arith.constant 0 : index
    %12 = vector.load %arg3[%c1, %c0_5, %c0_6] : memref<9x4x128xbf16, #tpu.memory_space<vmem>>, vector<1x4x128xbf16>
    %13 = vector.shape_cast %12 : vector<1x4x128xbf16> to vector<4x128xbf16>
    %cst_7 = arith.constant dense<0.000000e+00> : vector<288x128xf32>
    %14 = tpu.matmul %11, %13, %cst_7 {dimension_numbers = #tpu.dot_dimension_numbers<[1], [0], [0], [1], [0, 0, 1, 1], [], []>} : vector<288x4xbf16>, vector<4x128xbf16>, vector<288x128xf32> -> vector<288x128xf32>
    %15 = arith.addf %10, %14 : vector<288x128xf32>
    %16 = vector.extract_strided_slice %4 {offsets = [2, 0], sizes = [288, 4], strides = [1, 1]} : vector<326x4xbf16> to vector<288x4xbf16>
    %c2 = arith.constant 2 : index
    %c0_8 = arith.constant 0 : index
    %c0_9 = arith.constant 0 : index
    %17 = vector.load %arg3[%c2, %c0_8, %c0_9] : memref<9x4x128xbf16, #tpu.memory_space<vmem>>, vector<1x4x128xbf16>
    %18 = vector.shape_cast %17 : vector<1x4x128xbf16> to vector<4x128xbf16>
    %cst_10 = arith.constant dense<0.000000e+00> : vector<288x128xf32>
    %19 = tpu.matmul %16, %18, %cst_10 {dimension_numbers = #tpu.dot_dimension_numbers<[1], [0], [0], [1], [0, 0, 1, 1], [], []>} : vector<288x4xbf16>, vector<4x128xbf16>, vector<288x128xf32> -> vector<288x128xf32>
    %20 = arith.addf %15, %19 : vector<288x128xf32>
    %21 = vector.extract_strided_slice %4 {offsets = [18, 0], sizes = [288, 4], strides = [1, 1]} : vector<326x4xbf16> to vector<288x4xbf16>
    %c3 = arith.constant 3 : index
    %c0_11 = arith.constant 0 : index
    %c0_12 = arith.constant 0 : index
    %22 = vector.load %arg3[%c3, %c0_11, %c0_12] : memref<9x4x128xbf16, #tpu.memory_space<vmem>>, vector<1x4x128xbf16>
    %23 = vector.shape_cast %22 : vector<1x4x128xbf16> to vector<4x128xbf16>
    %cst_13 = arith.constant dense<0.000000e+00> : vector<288x128xf32>
    %24 = tpu.matmul %21, %23, %cst_13 {dimension_numbers = #tpu.dot_dimension_numbers<[1], [0], [0], [1], [0, 0, 1, 1], [], []>} : vector<288x4xbf16>, vector<4x128xbf16>, vector<288x128xf32> -> vector<288x128xf32>
    %25 = arith.addf %20, %24 : vector<288x128xf32>
    %26 = vector.extract_strided_slice %4 {offsets = [19, 0], sizes = [288, 4], strides = [1, 1]} : vector<326x4xbf16> to vector<288x4xbf16>
    %c4 = arith.constant 4 : index
    %c0_14 = arith.constant 0 : index
    %c0_15 = arith.constant 0 : index
    %27 = vector.load %arg3[%c4, %c0_14, %c0_15] : memref<9x4x128xbf16, #tpu.memory_space<vmem>>, vector<1x4x128xbf16>
    %28 = vector.shape_cast %27 : vector<1x4x128xbf16> to vector<4x128xbf16>
    %cst_16 = arith.constant dense<0.000000e+00> : vector<288x128xf32>
    %29 = tpu.matmul %26, %28, %cst_16 {dimension_numbers = #tpu.dot_dimension_numbers<[1], [0], [0], [1], [0, 0, 1, 1], [], []>} : vector<288x4xbf16>, vector<4x128xbf16>, vector<288x128xf32> -> vector<288x128xf32>
    %30 = arith.addf %25, %29 : vector<288x128xf32>
    %31 = vector.extract_strided_slice %4 {offsets = [20, 0], sizes = [288, 4], strides = [1, 1]} : vector<326x4xbf16> to vector<288x4xbf16>
    %c5 = arith.constant 5 : index
    %c0_17 = arith.constant 0 : index
    %c0_18 = arith.constant 0 : index
    %32 = vector.load %arg3[%c5, %c0_17, %c0_18] : memref<9x4x128xbf16, #tpu.memory_space<vmem>>, vector<1x4x128xbf16>
    %33 = vector.shape_cast %32 : vector<1x4x128xbf16> to vector<4x128xbf16>
    %cst_19 = arith.constant dense<0.000000e+00> : vector<288x128xf32>
    %34 = tpu.matmul %31, %33, %cst_19 {dimension_numbers = #tpu.dot_dimension_numbers<[1], [0], [0], [1], [0, 0, 1, 1], [], []>} : vector<288x4xbf16>, vector<4x128xbf16>, vector<288x128xf32> -> vector<288x128xf32>
    %35 = arith.addf %30, %34 : vector<288x128xf32>
    %36 = vector.extract_strided_slice %4 {offsets = [36, 0], sizes = [288, 4], strides = [1, 1]} : vector<326x4xbf16> to vector<288x4xbf16>
    %c6 = arith.constant 6 : index
    %c0_20 = arith.constant 0 : index
    %c0_21 = arith.constant 0 : index
    %37 = vector.load %arg3[%c6, %c0_20, %c0_21] : memref<9x4x128xbf16, #tpu.memory_space<vmem>>, vector<1x4x128xbf16>
    %38 = vector.shape_cast %37 : vector<1x4x128xbf16> to vector<4x128xbf16>
    %cst_22 = arith.constant dense<0.000000e+00> : vector<288x128xf32>
    %39 = tpu.matmul %36, %38, %cst_22 {dimension_numbers = #tpu.dot_dimension_numbers<[1], [0], [0], [1], [0, 0, 1, 1], [], []>} : vector<288x4xbf16>, vector<4x128xbf16>, vector<288x128xf32> -> vector<288x128xf32>
    %40 = arith.addf %35, %39 : vector<288x128xf32>
    %41 = vector.extract_strided_slice %4 {offsets = [37, 0], sizes = [288, 4], strides = [1, 1]} : vector<326x4xbf16> to vector<288x4xbf16>
    %c7 = arith.constant 7 : index
    %c0_23 = arith.constant 0 : index
    %c0_24 = arith.constant 0 : index
    %42 = vector.load %arg3[%c7, %c0_23, %c0_24] : memref<9x4x128xbf16, #tpu.memory_space<vmem>>, vector<1x4x128xbf16>
    %43 = vector.shape_cast %42 : vector<1x4x128xbf16> to vector<4x128xbf16>
    %cst_25 = arith.constant dense<0.000000e+00> : vector<288x128xf32>
    %44 = tpu.matmul %41, %43, %cst_25 {dimension_numbers = #tpu.dot_dimension_numbers<[1], [0], [0], [1], [0, 0, 1, 1], [], []>} : vector<288x4xbf16>, vector<4x128xbf16>, vector<288x128xf32> -> vector<288x128xf32>
    %45 = arith.addf %40, %44 : vector<288x128xf32>
    %46 = vector.extract_strided_slice %4 {offsets = [38, 0], sizes = [288, 4], strides = [1, 1]} : vector<326x4xbf16> to vector<288x4xbf16>
    %c8 = arith.constant 8 : index
    %c0_26 = arith.constant 0 : index
    %c0_27 = arith.constant 0 : index
    %47 = vector.load %arg3[%c8, %c0_26, %c0_27] : memref<9x4x128xbf16, #tpu.memory_space<vmem>>, vector<1x4x128xbf16>
    %48 = vector.shape_cast %47 : vector<1x4x128xbf16> to vector<4x128xbf16>
    %cst_28 = arith.constant dense<0.000000e+00> : vector<288x128xf32>
    %49 = tpu.matmul %46, %48, %cst_28 {dimension_numbers = #tpu.dot_dimension_numbers<[1], [0], [0], [1], [0, 0, 1, 1], [], []>} : vector<288x4xbf16>, vector<4x128xbf16>, vector<288x128xf32> -> vector<288x128xf32>
    %50 = arith.addf %45, %49 : vector<288x128xf32>
    %c0_29 = arith.constant 0 : index
    %c0_30 = arith.constant 0 : index
    %51 = vector.load %arg4[%c0_29, %c0_30] : memref<1x128xf32, #tpu.memory_space<vmem>>, vector<1x128xf32>
    %52 = vector.broadcast %51 : vector<1x128xf32> to vector<288x128xf32>
    %53 = arith.addf %50, %52 : vector<288x128xf32>
    %cst_31 = arith.constant 0.000000e+00 : f32
    %54 = vector.broadcast %cst_31 : f32 to vector<288x128xf32>
    %55 = arith.maximumf %53, %54 : vector<288x128xf32>
    %c0_32 = arith.constant 0 : index
    %c0_33 = arith.constant 0 : index
    %c0_34 = arith.constant 0 : index
    %56 = vector.load %arg5[%c0_32, %c0_33, %c0_34] : memref<1x288x128xf32, #tpu.memory_space<vmem>>, vector<1x288x128xf32>
    %57 = vector.shape_cast %56 : vector<1x288x128xf32> to vector<288x128xf32>
    %58 = vector.shape_cast %55 : vector<288x128xf32> to vector<1x288x128xf32>
    tpu.vector_store %arg5[%c0_32, %c0_33, %c0_34], %58 {strides = array<i32>} : memref<1x288x128xf32, #tpu.memory_space<vmem>>, vector<1x288x128xf32>,
    return
  }
  func.func @transform_0(%arg0: i32, %arg1: i32) -> (i32, i32, i32) {
    %c0_i32 = arith.constant 0 : i32
    %c0_i32_0 = arith.constant 0 : i32
    %c0_i32_1 = arith.constant 0 : i32
    return %arg0, %c0_i32, %c0_i32_0 : i32, i32, i32
  }
  func.func @transform_1(%arg0: i32, %arg1: i32) -> (i32, i32, i32) {
    %c0_i32 = arith.constant 0 : i32
    %c0_i32_0 = arith.constant 0 : i32
    %c0_i32_1 = arith.constant 0 : i32
    %c0_i32_2 = arith.constant 0 : i32
    return %c0_i32, %c0_i32_0, %c0_i32_1 : i32, i32, i32
  }
  func.func @transform_2(%arg0: i32, %arg1: i32) -> (i32, i32) {
    %c0_i32 = arith.constant 0 : i32
    %c0_i32_0 = arith.constant 0 : i32
    %c0_i32_1 = arith.constant 0 : i32
    return %c0_i32, %c0_i32_0 : i32, i32
  }
  func.func @transform_3(%arg0: i32, %arg1: i32) -> (i32, i32, i32) {
    %c0_i32 = arith.constant 0 : i32
    %c0_i32_0 = arith.constant 0 : i32
    return %arg0, %arg1, %c0_i32 : i32, i32, i32
  }
}

</mosaic_0001>

<llo_original>
// kernel: basic_conv2d.1
$region0: #{basic_conv2d.1}
  #allocation0 [shape = 'u32[]', space=smem, size = 0x4, offset = 0x4, fixed_abs, tag = 'smem constant byte address 0x4 - core index']
  #allocation1 [shape = 'u32[144,128]{1,0:T(1,128)}', space=vmem, size = 0x12000, scoped, tag = 'internal scratch']
  %s0 = inlined_call_operand.vmem [shape: bf16[2,326,4], index: 0, kind: input, shape index: {}]
  %s1 = inlined_call_operand.vmem [shape: bf16[9,4,128], index: 1, kind: input, shape index: {}]
  %s2 = inlined_call_operand.vmem [shape: f32[1,128], index: 2, kind: input, shape index: {}]
  %s3 = inlined_call_operand.vmem [shape: f32[2,288,128], index: 3, kind: output, shape index: {}]
  %s4 = sld [smem:[#allocation0]]
  $region45: #{basic_conv2d.1} parent=0
    _
  %s6 = ssub.s32 1, %s4
  %s7 = scalar_select 0, %s6, %s4
  loop: start=0, step=1, limit=4
  $region2: #{basic_conv2d.1} parent=0 // loop_pre_header
    _
  $region3: #{basic_conv2d.1} parent=0 // loop_header
    %s9 = sphi 0, %s13
    %p10 = scmp.ge.s32.totalorder %s9, 4
    %s16 = sphi 0, %s28
    %s17 = sphi 0, %s24
    %s18 = sphi 0, %s16
    %s19 = sphi 0, %s17
    %s20 = sphi 0, %s18
    %s21 = sphi 0, %s19
    %s31 = sphi 0, %s33
    %s34 = sphi 0, %s31
    %s35 = sphi 0, %s34
    %s51 = sphi 0, %s35
    %s55 = sphi 0, %s55
    %s57 = sphi 0, %s55
    %s58 = sphi 0, %s57
    %s72 = sphi 0, %s58
    %s76 = sphi 0, %s76
    %s78 = sphi 0, %s76
    %s79 = sphi 0, %s78
    %s93 = sphi 0, %s79
    %s101 = sphi 0, %s103
    %s104 = sphi 0, %s101
    %s105 = sphi 0, %s104
    %s121 = sphi 0, %s105
  $region4: #{basic_conv2d.1} parent=0 // loop_header_branch
    %12 = sbr.rel (%p10) target = $region8
  $region5: #{basic_conv2d.1} parent=0 // loop_body
    %s14 = ssub.s32 %s9, 1
    %s15 = ssub.s32 %s9, 2
    %s22 = sadd.s32 1, %s17
    %p23 = scmp.ge.s32.totalorder %s22, 1
    %s24 = scalar_select %p23, 0, %s22
    %s25 = sadd.s32 1, %s16
    %s26 = scalar_select %p23, %s25, %s16
    %p27 = scmp.ge.s32.totalorder %s26, 2
    %s28 = scalar_select %p27, 0, %s26
    %s29 = ssub.s32 %s16, %s28
    %p30 = scmp.eq.s32.totalorder %s29, 0
    %s32 = sadd.s32 %s31, 1
    %s33 = scalar_select %p30, %s31, %s32
    %p36 = pneg %p30
    %p37 = scmp.eq.s32.totalorder %s9, 1
    %p38 = por %p36, %p37
    %p39 = scmp.ne.s32.totalorder %s31, %s34
    %p40 = scmp.eq.s32.totalorder %s9, 0
    %p41 = por %p39, %p40
    %p42 = scmp.ne.s32.totalorder %s31, %s34
    %p43 = scmp.eq.s32.totalorder %s14, 1
    %p44 = por %p42, %p43
    %p45 = scmp.ne.s32.totalorder %s34, %s35
    %p46 = scmp.eq.s32.totalorder %s14, 0
    %p47 = por %p45, %p46
    %p48 = scmp.ne.s32.totalorder %s34, %s35
    %p49 = scmp.eq.s32.totalorder %s15, 1
    %p50 = por %p48, %p49
    %p52 = scmp.ne.s32.totalorder %s35, %s51
    %p53 = scmp.eq.s32.totalorder %s15, 0
    %p54 = por %p52, %p53
    %s56 = sadd.s32 %s55, 1
    %p59 = scmp.eq.s32.totalorder %s9, 1
    %p60 = scmp.ne.s32.totalorder %s55, %s57
    %p61 = scmp.eq.s32.totalorder %s9, 0
    %p62 = por %p60, %p61
    %p63 = scmp.ne.s32.totalorder %s55, %s57
    %p64 = scmp.eq.s32.totalorder %s14, 1
    %p65 = por %p63, %p64
    %p66 = scmp.ne.s32.totalorder %s57, %s58
    %p67 = scmp.eq.s32.totalorder %s14, 0
    %p68 = por %p66, %p67
    %p69 = scmp.ne.s32.totalorder %s57, %s58
    %p70 = scmp.eq.s32.totalorder %s15, 1
    %p71 = por %p69, %p70
    %p73 = scmp.ne.s32.totalorder %s58, %s72
    %p74 = scmp.eq.s32.totalorder %s15, 0
    %p75 = por %p73, %p74
    %s77 = sadd.s32 %s76, 1
    %p80 = scmp.eq.s32.totalorder %s9, 1
    %p81 = scmp.ne.s32.totalorder %s76, %s78
    %p82 = scmp.eq.s32.totalorder %s9, 0
    %p83 = por %p81, %p82
    %p84 = scmp.ne.s32.totalorder %s76, %s78
    %p85 = scmp.eq.s32.totalorder %s14, 1
    %p86 = por %p84, %p85
    %p87 = scmp.ne.s32.totalorder %s78, %s79
    %p88 = scmp.eq.s32.totalorder %s14, 0
    %p89 = por %p87, %p88
    %p90 = scmp.ne.s32.totalorder %s78, %s79
    %p91 = scmp.eq.s32.totalorder %s15, 1
    %p92 = por %p90, %p91
    %p94 = scmp.ne.s32.totalorder %s79, %s93
    %p95 = scmp.eq.s32.totalorder %s15, 0
    %p96 = por %p94, %p95
    %s97 = ssub.s32 %s16, %s28
    %s98 = ssub.s32 %s17, %s24
    %s99 = sor.u32 %s97, %s98
    %p100 = scmp.eq.s32.totalorder %s99, 0
    %s102 = sadd.s32 %s101, 1
    %s103 = scalar_select %p100, %s101, %s102
    %p106 = pneg %p100
    %p107 = scmp.eq.s32.totalorder %s9, 1
    %p108 = por %p106, %p107
    %p109 = scmp.ne.s32.totalorder %s101, %s104
    %p110 = scmp.eq.s32.totalorder %s9, 0
    %p111 = por %p109, %p110
    %p112 = scmp.ne.s32.totalorder %s101, %s104
    %p113 = scmp.eq.s32.totalorder %s14, 1
    %p114 = por %p112, %p113
    %p115 = scmp.ne.s32.totalorder %s104, %s105
    %p116 = scmp.eq.s32.totalorder %s14, 0
    %p117 = por %p115, %p116
    %p118 = scmp.ne.s32.totalorder %s104, %s105
    %p119 = scmp.eq.s32.totalorder %s15, 1
    %p120 = por %p118, %p119
    %p122 = scmp.ne.s32.totalorder %s105, %s121
    %p123 = scmp.eq.s32.totalorder %s15, 0
    %p124 = por %p122, %p123
    %p125 = scmp.le.s32.totalorder 1, %s9
    %p126 = scmp.lt.s32.totalorder %s9, 3
    %p127 = pnand %p125, %p126
    %p128 = pneg %p127
    // Predicated region
    $region9: #{basic_conv2d.1} parent=5 // pred_check
      _
    $region10: #{basic_conv2d.1} parent=5 // pred_check_branch
      %130 = sbr.rel (%p127) target = $region12
    $region11: #{basic_conv2d.1} parent=5 // pred_region
      %s131 = ssub.s32 %s9, 1
      // Predicated region
      $region13: #{basic_conv2d.1} parent=11 // pred_check
        %p132 = pneg %p68
      $region14: #{basic_conv2d.1} parent=11 // pred_check_branch
        %134 = sbr.rel (%p132) target = $region16
      $region15: #{basic_conv2d.1} parent=11 // pred_region
        _
      $region16: #{basic_conv2d.1} parent=11 // pred_fallthru
        _
      // Predicated region
      $region17: #{basic_conv2d.1} parent=11 // pred_check
        %p135 = pneg %p89
      $region18: #{basic_conv2d.1} parent=11 // pred_check_branch
        %137 = sbr.rel (%p135) target = $region20
      $region19: #{basic_conv2d.1} parent=11 // pred_region
        _
      $region20: #{basic_conv2d.1} parent=11 // pred_fallthru
        _
    $region12: #{basic_conv2d.1} parent=5 // pred_fallthru
      _
    %p138 = scmp.lt.s32.totalorder %s9, 2
    // Predicated region
    $region21: #{basic_conv2d.1} parent=5 // pred_check
      %p139 = pneg %p138
    $region22: #{basic_conv2d.1} parent=5 // pred_check_branch
      %141 = sbr.rel (%p139) target = $region24
    $region23: #{basic_conv2d.1} parent=5 // pred_region
      // Predicated region
      $region25: #{basic_conv2d.1} parent=23 // pred_check
        %p142 = pneg %p41
      $region26: #{basic_conv2d.1} parent=23 // pred_check_branch
        %144 = sbr.rel (%p142) target = $region28
      $region27: #{basic_conv2d.1} parent=23 // pred_region
        %p145 = scmp.lt.s32.totalorder %s16, 1
        %s146 = scalar_select %p145, %s16, 1
        %s147 = smul.addr %s146, 41
        %s148 = smul.addr %s147, 4
        %s149 = scalar_lea.vmem %s0, %s148
      $region28: #{basic_conv2d.1} parent=23 // pred_fallthru
        _
    $region24: #{basic_conv2d.1} parent=5 // pred_fallthru
      _
    %p150 = scmp.le.s32.totalorder 1, %s9
    %p151 = scmp.lt.s32.totalorder %s9, 3
    %p152 = pnand %p150, %p151
    %p153 = pneg %p152
    // Predicated region
    $region29: #{basic_conv2d.1} parent=5 // pred_check
      _
    $region30: #{basic_conv2d.1} parent=5 // pred_check_branch
      %155 = sbr.rel (%p152) target = $region32
    $region31: #{basic_conv2d.1} parent=5 // pred_region
      %s156 = ssub.s32 %s9, 1
      %p157 = scmp.lt.s32.totalorder %s18, 1
      %s158 = scalar_select %p157, %s18, 1
      %s159 = smul.addr %s158, 41
      %s160 = smul.addr %s159, 4
      %s161 = scalar_lea.vmem %s0, %s160
      %p162 = pneg %p47
      %p163 = pneg %p44
      %p164 = pneg %p68
      %p165 = pneg %p65
      %p166 = pneg %p89
      %p167 = pneg %p86
      %p168 = pneg %p117
      %p169 = pneg %p114
      %s170 = smul.u32 36, %s19
      %p171 = scmp.lt.s32.totalorder %s18, 1
      %s172 = scalar_select %p171, %s18, 1
      %p173 = scmp.lt.s32.totalorder %s170, 35
      %s174 = scalar_select %p173, %s170, 35
      %s175 = smul.addr %s172, 36
      %s176 = sadd.s32 %s174, %s175
      %s177 = smul.addr %s176, 8
      %s178 = scalar_lea.vmem %s3, %s177
      %p179 = scmp.lt.s32.totalorder %s18, 1
      %s180 = scalar_select %p179, %s18, 1
      %s181 = smul.addr %s180, 41
      %s182 = smul.addr %s181, 4
      %s183 = scalar_lea.vmem %s0, %s182
      %s184 = smul.u32 36, %s19
      %p185 = scmp.lt.s32.totalorder %s18, 1
      %s186 = scalar_select %p185, %s18, 1
      %p187 = scmp.lt.s32.totalorder %s184, 35
      %s188 = scalar_select %p187, %s184, 35
      %s189 = smul.addr %s186, 36
      %s190 = sadd.s32 %s188, %s189
      %s191 = smul.addr %s190, 8
      %s192 = scalar_lea.vmem %s3, %s191
      %s193 = smul.u32 36, %s19
      %s195 = smul.u32 %s19, 288
      %s196 = sshra.s32 %s195, 3
      %s197 = sand.u32 %s195, 7
      %s198 = smul.addr %s196, 4
      %s199 = scalar_lea.vmem %s183, %s198
      %v200 = vld [vmem:[%s199] sm:$0xf]
      %v201 = vld [vmem:[%s199 + $0x4] sm:$0xf]
      %v202 = vld [vmem:[%s199 + $0x8] sm:$0xf]
      %v203 = vld [vmem:[%s199 + $0xc] sm:$0xf]
      %v204 = vld [vmem:[%s199 + $0x10] sm:$0xf]
      %v205 = vld [vmem:[%s199 + $0x14] sm:$0xf]
      %v206 = vld [vmem:[%s199 + $0x18] sm:$0xf]
      %v207 = vld [vmem:[%s199 + $0x1c] sm:$0xf]
      %v208 = vld [vmem:[%s199 + $0x20] sm:$0xf]
      %v209 = vld [vmem:[%s199 + $0x24] sm:$0xf]
      %v210 = vld [vmem:[%s199 + $0x28] sm:$0xf]
      %v211 = vld [vmem:[%s199 + $0x2c] sm:$0xf]
      %v212 = vld [vmem:[%s199 + $0x30] sm:$0xf]
      %v213 = vld [vmem:[%s199 + $0x34] sm:$0xf]
      %v214 = vld [vmem:[%s199 + $0x38] sm:$0xf]
      %v215 = vld [vmem:[%s199 + $0x3c] sm:$0xf]
      %v216 = vld [vmem:[%s199 + $0x40] sm:$0xf]
      %v217 = vld [vmem:[%s199 + $0x44] sm:$0xf]
      %v218 = vld [vmem:[%s199 + $0x48] sm:$0xf]
      %v219 = vld [vmem:[%s199 + $0x4c] sm:$0xf]
      %v220 = vld [vmem:[%s199 + $0x50] sm:$0xf]
      %v221 = vld [vmem:[%s199 + $0x54] sm:$0xf]
      %v222 = vld [vmem:[%s199 + $0x58] sm:$0xf]
      %v223 = vld [vmem:[%s199 + $0x5c] sm:$0xf]
      %v224 = vld [vmem:[%s199 + $0x60] sm:$0xf]
      %v225 = vld [vmem:[%s199 + $0x64] sm:$0xf]
      %v226 = vld [vmem:[%s199 + $0x68] sm:$0xf]
      %v227 = vld [vmem:[%s199 + $0x6c] sm:$0xf]
      %v228 = vld [vmem:[%s199 + $0x70] sm:$0xf]
      %v229 = vld [vmem:[%s199 + $0x74] sm:$0xf]
      %v230 = vld [vmem:[%s199 + $0x78] sm:$0xf]
      %v231 = vld [vmem:[%s199 + $0x7c] sm:$0xf]
      %v232 = vld [vmem:[%s199 + $0x80] sm:$0xf]
      %v233 = vld [vmem:[%s199 + $0x84] sm:$0xf]
      %v234 = vld [vmem:[%s199 + $0x88] sm:$0xf]
      %v235 = vld [vmem:[%s199 + $0x8c] sm:$0xf]
      %v236 = vld [vmem:[%s199 + $0x90] sm:$0xf]
      %v237 = vld [vmem:[%s199 + $0x94] sm:$0xf]
      %v238 = vld [vmem:[%s199 + $0x98] sm:$0xf]
      %v239 = vld [vmem:[%s199 + $0x9c] sm:$0xf]
      %v240 = vld [vmem:[%s199 + $0xa0] sm:$0x7]
      %v241 = vld [vmem:[%s1] sm:$0x3]
      %s242 = scalar_lea.vmem %s1, 2
      %v243 = vld [vmem:[%s242] sm:$0x3]
      %v281 = vunpack.c.l.b16 %v200
      %v282 = vunpack.c.l.b16 %v201
      %v283 = vunpack.c.l.b16 %v202
      %v284 = vunpack.c.l.b16 %v203
      %v285 = vunpack.c.l.b16 %v204
      %v286 = vunpack.c.l.b16 %v205
      %v287 = vunpack.c.l.b16 %v206
      %v288 = vunpack.c.l.b16 %v207
      %v289 = vunpack.c.l.b16 %v208
      %v290 = vunpack.c.l.b16 %v209
      %v291 = vunpack.c.l.b16 %v210
      %v292 = vunpack.c.l.b16 %v211
      %v293 = vunpack.c.l.b16 %v212
      %v294 = vunpack.c.l.b16 %v213
      %v295 = vunpack.c.l.b16 %v214
      %v296 = vunpack.c.l.b16 %v215
      %v297 = vunpack.c.l.b16 %v216
      %v298 = vunpack.c.l.b16 %v217
      %v299 = vunpack.c.l.b16 %v218
      %v300 = vunpack.c.l.b16 %v219
      %v301 = vunpack.c.l.b16 %v220
      %v302 = vunpack.c.l.b16 %v221
      %v303 = vunpack.c.l.b16 %v222
      %v304 = vunpack.c.l.b16 %v223
      %v305 = vunpack.c.l.b16 %v224
      %v306 = vunpack.c.l.b16 %v225
      %v307 = vunpack.c.l.b16 %v226
      %v308 = vunpack.c.l.b16 %v227
      %v309 = vunpack.c.l.b16 %v228
      %v310 = vunpack.c.l.b16 %v229
      %v311 = vunpack.c.l.b16 %v230
      %v312 = vunpack.c.l.b16 %v231
      %v313 = vunpack.c.l.b16 %v232
      %v314 = vunpack.c.l.b16 %v233
      %v315 = vunpack.c.l.b16 %v234
      %v316 = vunpack.c.l.b16 %v235
      %v317 = vunpack.c.l.b16 %v236
      %v318 = vpack.c.b16 %v282, %v281
      %v319 = vpack.c.b16 %v284, %v283
      %v320 = vpack.c.b16 %v286, %v285
      %v321 = vpack.c.b16 %v288, %v287
      %v322 = vpack.c.b16 %v290, %v289
      %v323 = vpack.c.b16 %v292, %v291
      %v324 = vpack.c.b16 %v294, %v293
      %v325 = vpack.c.b16 %v296, %v295
      %v326 = vpack.c.b16 %v298, %v297
      %v327 = vpack.c.b16 %v300, %v299
      %v328 = vpack.c.b16 %v302, %v301
      %v329 = vpack.c.b16 %v304, %v303
      %v330 = vpack.c.b16 %v306, %v305
      %v331 = vpack.c.b16 %v308, %v307
      %v332 = vpack.c.b16 %v310, %v309
      %v333 = vpack.c.b16 %v312, %v311
      %v334 = vpack.c.b16 %v314, %v313
      %v335 = vpack.c.b16 %v316, %v315
      %v336 = vpack.c.b16 %v317, %v317
      %vm337 = vsmask.f32 7424
      %v339 = vshrl.u32 %v318, 16
      %v341 = vshll.u32 %v318, 16
      %v343 = vrot.slane %v341, 1
      %v344 = vor.u32 %v339, %v343
      %v346 = vshll.u32 %v319, 16
      %v348 = vrot.slane %v346, 1
      %v349 = vsel %vm337, %v344, %v348
      %v350 = vshrl.u32 %v319, 16
      %v352 = vor.u32 %v350, %v348
      %v354 = vshll.u32 %v320, 16
      %v356 = vrot.slane %v354, 1
      %v357 = vsel %vm337, %v352, %v356
      %v358 = vshrl.u32 %v320, 16
      %v360 = vor.u32 %v358, %v356
      %v362 = vshll.u32 %v321, 16
      %v364 = vrot.slane %v362, 1
      %v365 = vsel %vm337, %v360, %v364
      %v366 = vshrl.u32 %v321, 16
      %v368 = vor.u32 %v366, %v364
      %v370 = vshll.u32 %v322, 16
      %v372 = vrot.slane %v370, 1
      %v373 = vsel %vm337, %v368, %v372
      %v374 = vshrl.u32 %v322, 16
      %v376 = vor.u32 %v374, %v372
      %v378 = vshll.u32 %v323, 16
      %v380 = vrot.slane %v378, 1
      %v381 = vsel %vm337, %v376, %v380
      %v382 = vshrl.u32 %v323, 16
      %v384 = vor.u32 %v382, %v380
      %v386 = vshll.u32 %v324, 16
      %v388 = vrot.slane %v386, 1
      %v389 = vsel %vm337, %v384, %v388
      %v390 = vshrl.u32 %v324, 16
      %v392 = vor.u32 %v390, %v388
      %v394 = vshll.u32 %v325, 16
      %v396 = vrot.slane %v394, 1
      %v397 = vsel %vm337, %v392, %v396
      %v398 = vshrl.u32 %v325, 16
      %v400 = vor.u32 %v398, %v396
      %v402 = vshll.u32 %v326, 16
      %v404 = vrot.slane %v402, 1
      %v405 = vsel %vm337, %v400, %v404
      %v406 = vshrl.u32 %v326, 16
      %v408 = vor.u32 %v406, %v404
      %v410 = vshll.u32 %v327, 16
      %v412 = vrot.slane %v410, 1
      %v413 = vsel %vm337, %v408, %v412
      %v414 = vshrl.u32 %v327, 16
      %v416 = vor.u32 %v414, %v412
      %v418 = vshll.u32 %v328, 16
      %v420 = vrot.slane %v418, 1
      %v421 = vsel %vm337, %v416, %v420
      %v422 = vshrl.u32 %v328, 16
      %v424 = vor.u32 %v422, %v420
      %v426 = vshll.u32 %v329, 16
      %v428 = vrot.slane %v426, 1
      %v429 = vsel %vm337, %v424, %v428
      %v430 = vshrl.u32 %v329, 16
      %v432 = vor.u32 %v430, %v428
      %v434 = vshll.u32 %v330, 16
      %v436 = vrot.slane %v434, 1
      %v437 = vsel %vm337, %v432, %v436
      %v438 = vshrl.u32 %v330, 16
      %v440 = vor.u32 %v438, %v436
      %v442 = vshll.u32 %v331, 16
      %v444 = vrot.slane %v442, 1
      %v445 = vsel %vm337, %v440, %v444
      %v446 = vshrl.u32 %v331, 16
      %v448 = vor.u32 %v446, %v444
      %v450 = vshll.u32 %v332, 16
      %v452 = vrot.slane %v450, 1
      %v453 = vsel %vm337, %v448, %v452
      %v454 = vshrl.u32 %v332, 16
      %v456 = vor.u32 %v454, %v452
      %v458 = vshll.u32 %v333, 16
      %v460 = vrot.slane %v458, 1
      %v461 = vsel %vm337, %v456, %v460
      %v462 = vshrl.u32 %v333, 16
      %v464 = vor.u32 %v462, %v460
      %v466 = vshll.u32 %v334, 16
      %v468 = vrot.slane %v466, 1
      %v469 = vsel %vm337, %v464, %v468
      %v470 = vshrl.u32 %v334, 16
      %v472 = vor.u32 %v470, %v468
      %v474 = vshll.u32 %v335, 16
      %v476 = vrot.slane %v474, 1
      %v477 = vsel %vm337, %v472, %v476
      %v478 = vshrl.u32 %v335, 16
      %v480 = vor.u32 %v478, %v476
      %v482 = vshll.u32 %v336, 16
      %v484 = vrot.slane %v482, 1
      %v485 = vsel %vm337, %v480, %v484
      %vm486 = vcmask 31744
      %v488 = vsel %vm486, %v349, 0
      %v491 = vsel %vm486, %v357, 0
      %v494 = vsel %vm486, %v365, 0
      %v497 = vsel %vm486, %v373, 0
      %v500 = vsel %vm486, %v381, 0
      %v503 = vsel %vm486, %v389, 0
      %v506 = vsel %vm486, %v397, 0
      %v509 = vsel %vm486, %v405, 0
      %v512 = vsel %vm486, %v413, 0
      %v515 = vsel %vm486, %v421, 0
      %v518 = vsel %vm486, %v429, 0
      %v521 = vsel %vm486, %v437, 0
      %v524 = vsel %vm486, %v445, 0
      %v527 = vsel %vm486, %v453, 0
      %v530 = vsel %vm486, %v461, 0
      %v533 = vsel %vm486, %v469, 0
      %v536 = vsel %vm486, %v477, 0
      %v539 = vsel %vm486, %v485, 0
      %vm541 = vcmask 1041408
      %v543 = vsel %vm541, %v243, 0
      %545 = vmatprep.subr.bf16.mxu0 0
      %546 = vmatpush1.bf16.msra.mxu0 %v543
      %547 = vmatprep.subr.bf16.mxu0 0
      %548 = vmatpush1.bf16.msra.mxu0 0
      %549 = vmatprep.subr.bf16.mxu0 0
      %550 = vmatpush1.bf16.msra.mxu0 0
      %551 = vmatprep.subr.bf16.mxu0 0
      %552 = vmatpush1.bf16.msra.mxu0 0
      %553 = vmatprep.subr.bf16.mxu0 0
      %554 = vmatpush1.bf16.msra.mxu0 0
      %555 = vmatprep.subr.bf16.mxu0 0
      %556 = vmatpush1.bf16.msra.mxu0 0
      %557 = vmatprep.subr.bf16.mxu0 0
      %558 = vmatpush1.bf16.msra.mxu0 0
      %559 = vmatprep.subr.bf16.mxu0 0
      %560 = vmatpush1.bf16.msra.mxu0 0
      %561 = vmatprep.subr.bf16.mxu0 0
      %562 = vmatpush1.bf16.msra.mxu0 0
      %563 = vmatprep.subr.bf16.mxu0 0
      %564 = vmatpush1.bf16.msra.mxu0 0
      %565 = vmatprep.subr.bf16.mxu0 0
      %566 = vmatpush1.bf16.msra.mxu0 0
      %567 = vmatprep.subr.bf16.mxu0 0
      %568 = vmatpush1.bf16.msra.mxu0 0
      %569 = vmatprep.subr.bf16.mxu0 0
      %570 = vmatpush1.bf16.msra.mxu0 0
      %571 = vmatprep.subr.bf16.mxu0 0
      %572 = vmatpush1.bf16.msra.mxu0 0
      %573 = vmatprep.subr.bf16.mxu0 0
      %574 = vmatpush1.bf16.msra.mxu0 0
      %575 = vmatprep.subr.bf16.mxu0 0
      %576 = vmatpush1.bf16.msra.mxu0 0
      %577 = vmatprep.mubr.bf16.mxu0 0
      %578 = vmatmul.mubr.bf16.gmra.mrb[0].mxu0 %v488
      %v579 = vpop.f32.mrb[0].mxu0
      %v580 = vadd.f32 0.0, %v579
      %v581 = vpop.f32.mrb[0].mxu0
      %v582 = vpop.f32.mrb[0].mxu0
      %v583 = vadd.f32 0.0, %v582
      %v584 = vpop.f32.mrb[0].mxu0
      %585 = vmatprep.mubr.bf16.mxu0 0
      %586 = vmatmul.mubr.bf16.gmra.mrb[0].mxu0 %v491
      %v587 = vpop.f32.mrb[0].mxu0
      %v588 = vadd.f32 0.0, %v587
      %v589 = vpop.f32.mrb[0].mxu0
      %v590 = vpop.f32.mrb[0].mxu0
      %v591 = vadd.f32 0.0, %v590
      %v592 = vpop.f32.mrb[0].mxu0
      %593 = vmatprep.mubr.bf16.mxu0 0
      %594 = vmatmul.mubr.bf16.gmra.mrb[0].mxu0 %v494
      %v595 = vpop.f32.mrb[0].mxu0
      %v596 = vadd.f32 0.0, %v595
      %v597 = vpop.f32.mrb[0].mxu0
      %v598 = vpop.f32.mrb[0].mxu0
      %v599 = vadd.f32 0.0, %v598
      %v600 = vpop.f32.mrb[0].mxu0
      %601 = vmatprep.mubr.bf16.mxu0 0
      %602 = vmatmul.mubr.bf16.gmra.mrb[0].mxu0 %v497
      %v603 = vpop.f32.mrb[0].mxu0
      %v604 = vadd.f32 0.0, %v603
      %v605 = vpop.f32.mrb[0].mxu0
      %v606 = vpop.f32.mrb[0].mxu0
      %v607 = vadd.f32 0.0, %v606
      %v608 = vpop.f32.mrb[0].mxu0
      %609 = vmatprep.mubr.bf16.mxu0 0
      %610 = vmatmul.mubr.bf16.gmra.mrb[0].mxu0 %v500
      %v611 = vpop.f32.mrb[0].mxu0
      %v612 = vadd.f32 0.0, %v611
      %v613 = vpop.f32.mrb[0].mxu0
      %v614 = vpop.f32.mrb[0].mxu0
      %v615 = vadd.f32 0.0, %v614
      %v616 = vpop.f32.mrb[0].mxu0
      %617 = vmatprep.mubr.bf16.mxu0 0
      %618 = vmatmul.mubr.bf16.gmra.mrb[0].mxu0 %v503
      %v619 = vpop.f32.mrb[0].mxu0
      %v620 = vadd.f32 0.0, %v619
      %v621 = vpop.f32.mrb[0].mxu0
      %v622 = vpop.f32.mrb[0].mxu0
      %v623 = vadd.f32 0.0, %v622
      %v624 = vpop.f32.mrb[0].mxu0
      %625 = vmatprep.mubr.bf16.mxu0 0
      %626 = vmatmul.mubr.bf16.gmra.mrb[0].mxu0 %v506
      %v627 = vpop.f32.mrb[0].mxu0
      %v628 = vadd.f32 0.0, %v627
      %v629 = vpop.f32.mrb[0].mxu0
      %v630 = vpop.f32.mrb[0].mxu0
      %v631 = vadd.f32 0.0, %v630
      %v632 = vpop.f32.mrb[0].mxu0
      %633 = vmatprep.mubr.bf16.mxu0 0
      %634 = vmatmul.mubr.bf16.gmra.mrb[0].mxu0 %v509
      %v635 = vpop.f32.mrb[0].mxu0
      %v636 = vadd.f32 0.0, %v635
      %v637 = vpop.f32.mrb[0].mxu0
      %v638 = vpop.f32.mrb[0].mxu0
      %v639 = vadd.f32 0.0, %v638
      %v640 = vpop.f32.mrb[0].mxu0
      %641 = vmatprep.mubr.bf16.mxu0 0
      %642 = vmatmul.mubr.bf16.gmra.mrb[0].mxu0 %v512
      %v643 = vpop.f32.mrb[0].mxu0
      %v644 = vadd.f32 0.0, %v643
      %v645 = vpop.f32.mrb[0].mxu0
      %v646 = vpop.f32.mrb[0].mxu0
      %v647 = vadd.f32 0.0, %v646
      %v648 = vpop.f32.mrb[0].mxu0
      %649 = vmatprep.mubr.bf16.mxu0 0
      %650 = vmatmul.mubr.bf16.gmra.mrb[0].mxu0 %v515
      %v651 = vpop.f32.mrb[0].mxu0
      %v652 = vadd.f32 0.0, %v651
      %v653 = vpop.f32.mrb[0].mxu0
      %v654 = vpop.f32.mrb[0].mxu0
      %v655 = vadd.f32 0.0, %v654
      %v656 = vpop.f32.mrb[0].mxu0
      %657 = vmatprep.mubr.bf16.mxu0 0
      %658 = vmatmul.mubr.bf16.gmra.mrb[0].mxu0 %v518
      %v659 = vpop.f32.mrb[0].mxu0
      %v660 = vadd.f32 0.0, %v659
      %v661 = vpop.f32.mrb[0].mxu0
      %v662 = vpop.f32.mrb[0].mxu0
      %v663 = vadd.f32 0.0, %v662
      %v664 = vpop.f32.mrb[0].mxu0
      %665 = vmatprep.mubr.bf16.mxu0 0
      %666 = vmatmul.mubr.bf16.gmra.mrb[0].mxu0 %v521
      %v667 = vpop.f32.mrb[0].mxu0
      %v668 = vadd.f32 0.0, %v667
      %v669 = vpop.f32.mrb[0].mxu0
      %v670 = vpop.f32.mrb[0].mxu0
      %v671 = vadd.f32 0.0, %v670
      %v672 = vpop.f32.mrb[0].mxu0
      %673 = vmatprep.mubr.bf16.mxu0 0
      %674 = vmatmul.mubr.bf16.gmra.mrb[0].mxu0 %v524
      %v675 = vpop.f32.mrb[0].mxu0
      %v676 = vadd.f32 0.0, %v675
      %v677 = vpop.f32.mrb[0].mxu0
      %v678 = vpop.f32.mrb[0].mxu0
      %v679 = vadd.f32 0.0, %v678
      %v680 = vpop.f32.mrb[0].mxu0
      %681 = vmatprep.mubr.bf16.mxu0 0
      %682 = vmatmul.mubr.bf16.gmra.mrb[0].mxu0 %v527
      %v683 = vpop.f32.mrb[0].mxu0
      %v684 = vadd.f32 0.0, %v683
      %v685 = vpop.f32.mrb[0].mxu0
      %v686 = vpop.f32.mrb[0].mxu0
      %v687 = vadd.f32 0.0, %v686
      %v688 = vpop.f32.mrb[0].mxu0
      %689 = vmatprep.mubr.bf16.mxu0 0
      %690 = vmatmul.mubr.bf16.gmra.mrb[0].mxu0 %v530
      %v691 = vpop.f32.mrb[0].mxu0
      %v692 = vadd.f32 0.0, %v691
      %v693 = vpop.f32.mrb[0].mxu0
      %v694 = vpop.f32.mrb[0].mxu0
      %v695 = vadd.f32 0.0, %v694
      %v696 = vpop.f32.mrb[0].mxu0
      %697 = vmatprep.mubr.bf16.mxu0 0
      %698 = vmatmul.mubr.bf16.gmra.mrb[0].mxu0 %v533
      %v699 = vpop.f32.mrb[0].mxu0
      %v700 = vadd.f32 0.0, %v699
      %v701 = vpop.f32.mrb[0].mxu0
      %v702 = vpop.f32.mrb[0].mxu0
      %v703 = vadd.f32 0.0, %v702
      %v704 = vpop.f32.mrb[0].mxu0
      %705 = vmatprep.mubr.bf16.mxu0 0
      %706 = vmatmul.mubr.bf16.gmra.mrb[0].mxu0 %v536
      %v707 = vpop.f32.mrb[0].mxu0
      %v708 = vadd.f32 0.0, %v707
      %v709 = vpop.f32.mrb[0].mxu0
      %v710 = vpop.f32.mrb[0].mxu0
      %v711 = vadd.f32 0.0, %v710
      %v712 = vpop.f32.mrb[0].mxu0
      %713 = vmatprep.mubr.bf16.mxu0 0
      %714 = vmatmul.mubr.bf16.gmra.mrb[0].mxu0 %v539
      %v715 = vpop.f32.mrb[0].mxu0
      %v716 = vadd.f32 0.0, %v715
      %v717 = vpop.f32.mrb[0].mxu0
      %v718 = vpop.f32.mrb[0].mxu0
      %v719 = vadd.f32 0.0, %v718
      %v720 = vpop.f32.mrb[0].mxu0
      %721 = vdwg.mxu0
      %v722 = vsel %vm486, %v318, 0
      %v724 = vsel %vm486, %v319, 0
      %v726 = vsel %vm486, %v320, 0
      %v728 = vsel %vm486, %v321, 0
      %v730 = vsel %vm486, %v322, 0
      %v732 = vsel %vm486, %v323, 0
      %v734 = vsel %vm486, %v324, 0
      %v736 = vsel %vm486, %v325, 0
      %v738 = vsel %vm486, %v326, 0
      %v740 = vsel %vm486, %v327, 0
      %v742 = vsel %vm486, %v328, 0
      %v744 = vsel %vm486, %v329, 0
      %v746 = vsel %vm486, %v330, 0
      %v748 = vsel %vm486, %v331, 0
      %v750 = vsel %vm486, %v332, 0
      %v752 = vsel %vm486, %v333, 0
      %v754 = vsel %vm486, %v334, 0
      %v756 = vsel %vm486, %v335, 0
      %v759 = vsel %vm541, %v241, 0
      %761 = vmatprep.subr.bf16.mxu0 0
      %762 = vmatpush1.bf16.msra.mxu0 %v759
      %763 = vmatprep.subr.bf16.mxu0 0
      %764 = vmatpush1.bf16.msra.mxu0 0
      %765 = vmatprep.subr.bf16.mxu0 0
      %766 = vmatpush1.bf16.msra.mxu0 0
      %767 = vmatprep.subr.bf16.mxu0 0
      %768 = vmatpush1.bf16.msra.mxu0 0
      %769 = vmatprep.subr.bf16.mxu0 0
      %770 = vmatpush1.bf16.msra.mxu0 0
      %771 = vmatprep.subr.bf16.mxu0 0
      %772 = vmatpush1.bf16.msra.mxu0 0
      %773 = vmatprep.subr.bf16.mxu0 0
      %774 = vmatpush1.bf16.msra.mxu0 0
      %775 = vmatprep.subr.bf16.mxu0 0
      %776 = vmatpush1.bf16.msra.mxu0 0
      %777 = vmatprep.subr.bf16.mxu0 0
      %778 = vmatpush1.bf16.msra.mxu0 0
      %779 = vmatprep.subr.bf16.mxu0 0
      %780 = vmatpush1.bf16.msra.mxu0 0
      %781 = vmatprep.subr.bf16.mxu0 0
      %782 = vmatpush1.bf16.msra.mxu0 0
      %783 = vmatprep.subr.bf16.mxu0 0
      %784 = vmatpush1.bf16.msra.mxu0 0
      %785 = vmatprep.subr.bf16.mxu0 0
      %786 = vmatpush1.bf16.msra.mxu0 0
      %787 = vmatprep.subr.bf16.mxu0 0
      %788 = vmatpush1.bf16.msra.mxu0 0
      %789 = vmatprep.subr.bf16.mxu0 0
      %790 = vmatpush1.bf16.msra.mxu0 0
      %791 = vmatprep.subr.bf16.mxu0 0
      %792 = vmatpush1.bf16.msra.mxu0 0
      %793 = vmatprep.mubr.bf16.mxu0 0
      %794 = vmatmul.mubr.bf16.gmra.mrb[0].mxu0 %v722
      %v795 = vpop.f32.mrb[0].mxu0
      %v796 = vadd.f32 %v580, %v795
      %v797 = vpop.f32.mrb[0].mxu0
      %v798 = vpop.f32.mrb[0].mxu0
      %v799 = vadd.f32 %v583, %v798
      %v800 = vpop.f32.mrb[0].mxu0
      %801 = vmatprep.mubr.bf16.mxu0 0
      %802 = vmatmul.mubr.bf16.gmra.mrb[0].mxu0 %v724
      %v803 = vpop.f32.mrb[0].mxu0
      %v804 = vadd.f32 %v588, %v803
      %v805 = vpop.f32.mrb[0].mxu0
      %v806 = vpop.f32.mrb[0].mxu0
      %v807 = vadd.f32 %v591, %v806
      %v808 = vpop.f32.mrb[0].mxu0
      %809 = vmatprep.mubr.bf16.mxu0 0
      %810 = vmatmul.mubr.bf16.gmra.mrb[0].mxu0 %v726
      %v811 = vpop.f32.mrb[0].mxu0
      %v812 = vadd.f32 %v596, %v811
      %v813 = vpop.f32.mrb[0].mxu0
      %v814 = vpop.f32.mrb[0].mxu0
      %v815 = vadd.f32 %v599, %v814
      %v816 = vpop.f32.mrb[0].mxu0
      %817 = vmatprep.mubr.bf16.mxu0 0
      %818 = vmatmul.mubr.bf16.gmra.mrb[0].mxu0 %v728
      %v819 = vpop.f32.mrb[0].mxu0
      %v820 = vadd.f32 %v604, %v819
      %v821 = vpop.f32.mrb[0].mxu0
      %v822 = vpop.f32.mrb[0].mxu0
      %v823 = vadd.f32 %v607, %v822
      %v824 = vpop.f32.mrb[0].mxu0
      %825 = vmatprep.mubr.bf16.mxu0 0
      %826 = vmatmul.mubr.bf16.gmra.mrb[0].mxu0 %v730
      %v827 = vpop.f32.mrb[0].mxu0
      %v828 = vadd.f32 %v612, %v827
      %v829 = vpop.f32.mrb[0].mxu0
      %v830 = vpop.f32.mrb[0].mxu0
      %v831 = vadd.f32 %v615, %v830
      %v832 = vpop.f32.mrb[0].mxu0
      %833 = vmatprep.mubr.bf16.mxu0 0
      %834 = vmatmul.mubr.bf16.gmra.mrb[0].mxu0 %v732
      %v835 = vpop.f32.mrb[0].mxu0
      %v836 = vadd.f32 %v620, %v835
      %v837 = vpop.f32.mrb[0].mxu0
      %v838 = vpop.f32.mrb[0].mxu0
      %v839 = vadd.f32 %v623, %v838
      %v840 = vpop.f32.mrb[0].mxu0
      %841 = vmatprep.mubr.bf16.mxu0 0
      %842 = vmatmul.mubr.bf16.gmra.mrb[0].mxu0 %v734
      %v843 = vpop.f32.mrb[0].mxu0
      %v844 = vadd.f32 %v628, %v843
      %v845 = vpop.f32.mrb[0].mxu0
      %v846 = vpop.f32.mrb[0].mxu0
      %v847 = vadd.f32 %v631, %v846
      %v848 = vpop.f32.mrb[0].mxu0
      %849 = vmatprep.mubr.bf16.mxu0 0
      %850 = vmatmul.mubr.bf16.gmra.mrb[0].mxu0 %v736
      %v851 = vpop.f32.mrb[0].mxu0
      %v852 = vadd.f32 %v636, %v851
      %v853 = vpop.f32.mrb[0].mxu0
      %v854 = vpop.f32.mrb[0].mxu0
      %v855 = vadd.f32 %v639, %v854
      %v856 = vpop.f32.mrb[0].mxu0
      %857 = vmatprep.mubr.bf16.mxu0 0
      %858 = vmatmul.mubr.bf16.gmra.mrb[0].mxu0 %v738
      %v859 = vpop.f32.mrb[0].mxu0
      %v860 = vadd.f32 %v644, %v859
      %v861 = vpop.f32.mrb[0].mxu0
      %v862 = vpop.f32.mrb[0].mxu0
      %v863 = vadd.f32 %v647, %v862
      %v864 = vpop.f32.mrb[0].mxu0
      %865 = vmatprep.mubr.bf16.mxu0 0
      %866 = vmatmul.mubr.bf16.gmra.mrb[0].mxu0 %v740
      %v867 = vpop.f32.mrb[0].mxu0
      %v868 = vadd.f32 %v652, %v867
      %v869 = vpop.f32.mrb[0].mxu0
      %v870 = vpop.f32.mrb[0].mxu0
      %v871 = vadd.f32 %v655, %v870
      %v872 = vpop.f32.mrb[0].mxu0
      %873 = vmatprep.mubr.bf16.mxu0 0
      %874 = vmatmul.mubr.bf16.gmra.mrb[0].mxu0 %v742
      %v875 = vpop.f32.mrb[0].mxu0
      %v876 = vadd.f32 %v660, %v875
      %v877 = vpop.f32.mrb[0].mxu0
      %v878 = vpop.f32.mrb[0].mxu0
      %v879 = vadd.f32 %v663, %v878
      %v880 = vpop.f32.mrb[0].mxu0
      %881 = vmatprep.mubr.bf16.mxu0 0
      %882 = vmatmul.mubr.bf16.gmra.mrb[0].mxu0 %v744
      %v883 = vpop.f32.mrb[0].mxu0
      %v884 = vadd.f32 %v668, %v883
      %v885 = vpop.f32.mrb[0].mxu0
      %v886 = vpop.f32.mrb[0].mxu0
      %v887 = vadd.f32 %v671, %v886
      %v888 = vpop.f32.mrb[0].mxu0
      %889 = vmatprep.mubr.bf16.mxu0 0
      %890 = vmatmul.mubr.bf16.gmra.mrb[0].mxu0 %v746
      %v891 = vpop.f32.mrb[0].mxu0
      %v892 = vadd.f32 %v676, %v891
      %v893 = vpop.f32.mrb[0].mxu0
      %v894 = vpop.f32.mrb[0].mxu0
      %v895 = vadd.f32 %v679, %v894
      %v896 = vpop.f32.mrb[0].mxu0
      %897 = vmatprep.mubr.bf16.mxu0 0
      %898 = vmatmul.mubr.bf16.gmra.mrb[0].mxu0 %v748
      %v899 = vpop.f32.mrb[0].mxu0
      %v900 = vadd.f32 %v684, %v899
      %v901 = vpop.f32.mrb[0].mxu0
      %v902 = vpop.f32.mrb[0].mxu0
      %v903 = vadd.f32 %v687, %v902
      %v904 = vpop.f32.mrb[0].mxu0
      %905 = vmatprep.mubr.bf16.mxu0 0
      %906 = vmatmul.mubr.bf16.gmra.mrb[0].mxu0 %v750
      %v907 = vpop.f32.mrb[0].mxu0
      %v908 = vadd.f32 %v692, %v907
      %v909 = vpop.f32.mrb[0].mxu0
      %v910 = vpop.f32.mrb[0].mxu0
      %v911 = vadd.f32 %v695, %v910
      %v912 = vpop.f32.mrb[0].mxu0
      %913 = vmatprep.mubr.bf16.mxu0 0
      %914 = vmatmul.mubr.bf16.gmra.mrb[0].mxu0 %v752
      %v915 = vpop.f32.mrb[0].mxu0
      %v916 = vadd.f32 %v700, %v915
      %v917 = vpop.f32.mrb[0].mxu0
      %v918 = vpop.f32.mrb[0].mxu0
      %v919 = vadd.f32 %v703, %v918
      %v920 = vpop.f32.mrb[0].mxu0
      %921 = vmatprep.mubr.bf16.mxu0 0
      %922 = vmatmul.mubr.bf16.gmra.mrb[0].mxu0 %v754
      %v923 = vpop.f32.mrb[0].mxu0
      %v924 = vadd.f32 %v708, %v923
      %v925 = vpop.f32.mrb[0].mxu0
      %v926 = vpop.f32.mrb[0].mxu0
      %v927 = vadd.f32 %v711, %v926
      %v928 = vpop.f32.mrb[0].mxu0
      %929 = vmatprep.mubr.bf16.mxu0 0
      %930 = vmatmul.mubr.bf16.gmra.mrb[0].mxu0 %v756
      %v931 = vpop.f32.mrb[0].mxu0
      %v932 = vadd.f32 %v716, %v931
      %v933 = vpop.f32.mrb[0].mxu0
      %v934 = vpop.f32.mrb[0].mxu0
      %v935 = vadd.f32 %v719, %v934
      %v936 = vpop.f32.mrb[0].mxu0
      %937 = vdwg.mxu0
      %s938 = scalar_lea.vmem %s1, 4
      %v939 = vld [vmem:[%s938] sm:$0x3]
      %vm940 = vcmask 1046528
      %v941 = vrot.slane %v318, 1
      %v942 = vrot.slane %v319, 1
      %v943 = vsel %vm940, %v941, %v942
      %v944 = vrot.slane %v320, 1
      %v945 = vsel %vm940, %v942, %v944
      %v946 = vrot.slane %v321, 1
      %v947 = vsel %vm940, %v944, %v946
      %v948 = vrot.slane %v322, 1
      %v949 = vsel %vm940, %v946, %v948
      %v950 = vrot.slane %v323, 1
      %v951 = vsel %vm940, %v948, %v950
      %v952 = vrot.slane %v324, 1
      %v953 = vsel %vm940, %v950, %v952
      %v954 = vrot.slane %v325, 1
      %v955 = vsel %vm940, %v952, %v954
      %v956 = vrot.slane %v326, 1
      %v957 = vsel %vm940, %v954, %v956
      %v958 = vrot.slane %v327, 1
      %v959 = vsel %vm940, %v956, %v958
      %v960 = vrot.slane %v328, 1
      %v961 = vsel %vm940, %v958, %v960
      %v962 = vrot.slane %v329, 1
      %v963 = vsel %vm940, %v960, %v962
      %v964 = vrot.slane %v330, 1
      %v965 = vsel %vm940, %v962, %v964
      %v966 = vrot.slane %v331, 1
      %v967 = vsel %vm940, %v964, %v966
      %v968 = vrot.slane %v332, 1
      %v969 = vsel %vm940, %v966, %v968
      %v970 = vrot.slane %v333, 1
      %v971 = vsel %vm940, %v968, %v970
      %v972 = vrot.slane %v334, 1
      %v973 = vsel %vm940, %v970, %v972
      %v974 = vrot.slane %v335, 1
      %v975 = vsel %vm940, %v972, %v974
      %v976 = vrot.slane %v336, 1
      %v977 = vsel %vm940, %v974, %v976
      %v979 = vsel %vm486, %v943, 0
      %v982 = vsel %vm486, %v945, 0
      %v985 = vsel %vm486, %v947, 0
      %v988 = vsel %vm486, %v949, 0
      %v991 = vsel %vm486, %v951, 0
      %v994 = vsel %vm486, %v953, 0
      %v997 = vsel %vm486, %v955, 0
      %v1000 = vsel %vm486, %v957, 0
      %v1003 = vsel %vm486, %v959, 0
      %v1006 = vsel %vm486, %v961, 0
      %v1009 = vsel %vm486, %v963, 0
      %v1012 = vsel %vm486, %v965, 0
      %v1015 = vsel %vm486, %v967, 0
      %v1018 = vsel %vm486, %v969, 0
      %v1021 = vsel %vm486, %v971, 0
      %v1024 = vsel %vm486, %v973, 0
      %v1027 = vsel %vm486, %v975, 0
      %v1030 = vsel %vm486, %v977, 0
      %v1033 = vsel %vm541, %v939, 0
      %1035 = vmatprep.subr.bf16.mxu0 0
      %1036 = vmatpush1.bf16.msra.mxu0 %v1033
      %1037 = vmatprep.subr.bf16.mxu0 0
      %1038 = vmatpush1.bf16.msra.mxu0 0
      %1039 = vmatprep.subr.bf16.mxu0 0
      %1040 = vmatpush1.bf16.msra.mxu0 0
      %1041 = vmatprep.subr.bf16.mxu0 0
      %1042 = vmatpush1.bf16.msra.mxu0 0
      %1043 = vmatprep.subr.bf16.mxu0 0
      %1044 = vmatpush1.bf16.msra.mxu0 0
      %1045 = vmatprep.subr.bf16.mxu0 0
      %1046 = vmatpush1.bf16.msra.mxu0 0
      %1047 = vmatprep.subr.bf16.mxu0 0
      %1048 = vmatpush1.bf16.msra.mxu0 0
      %1049 = vmatprep.subr.bf16.mxu0 0
      %1050 = vmatpush1.bf16.msra.mxu0 0
      %1051 = vmatprep.subr.bf16.mxu0 0
      %1052 = vmatpush1.bf16.msra.mxu0 0
      %1053 = vmatprep.subr.bf16.mxu0 0
      %1054 = vmatpush1.bf16.msra.mxu0 0
      %1055 = vmatprep.subr.bf16.mxu0 0
      %1056 = vmatpush1.bf16.msra.mxu0 0
      %1057 = vmatprep.subr.bf16.mxu0 0
      %1058 = vmatpush1.bf16.msra.mxu0 0
      %1059 = vmatprep.subr.bf16.mxu0 0
      %1060 = vmatpush1.bf16.msra.mxu0 0
      %1061 = vmatprep.subr.bf16.mxu0 0
      %1062 = vmatpush1.bf16.msra.mxu0 0
      %1063 = vmatprep.subr.bf16.mxu0 0
      %1064 = vmatpush1.bf16.msra.mxu0 0
      %1065 = vmatprep.subr.bf16.mxu0 0
      %1066 = vmatpush1.bf16.msra.mxu0 0
      %1067 = vmatprep.mubr.bf16.mxu0 0
      %1068 = vmatmul.mubr.bf16.gmra.mrb[0].mxu0 %v979
      %v1069 = vpop.f32.mrb[0].mxu0
      %v1070 = vadd.f32 0.0, %v1069
      %v1071 = vpop.f32.mrb[0].mxu0
      %v1072 = vpop.f32.mrb[0].mxu0
      %v1073 = vadd.f32 0.0, %v1072
      %v1074 = vpop.f32.mrb[0].mxu0
      %1075 = vmatprep.mubr.bf16.mxu0 0
      %1076 = vmatmul.mubr.bf16.gmra.mrb[0].mxu0 %v982
      %v1077 = vpop.f32.mrb[0].mxu0
      %v1078 = vadd.f32 0.0, %v1077
      %v1079 = vpop.f32.mrb[0].mxu0
      %v1080 = vpop.f32.mrb[0].mxu0
      %v1081 = vadd.f32 0.0, %v1080
      %v1082 = vpop.f32.mrb[0].mxu0
      %1083 = vmatprep.mubr.bf16.mxu0 0
      %1084 = vmatmul.mubr.bf16.gmra.mrb[0].mxu0 %v985
      %v1085 = vpop.f32.mrb[0].mxu0
      %v1086 = vadd.f32 0.0, %v1085
      %v1087 = vpop.f32.mrb[0].mxu0
      %v1088 = vpop.f32.mrb[0].mxu0
      %v1089 = vadd.f32 0.0, %v1088
      %v1090 = vpop.f32.mrb[0].mxu0
      %1091 = vmatprep.mubr.bf16.mxu0 0
      %1092 = vmatmul.mubr.bf16.gmra.mrb[0].mxu0 %v988
      %v1093 = vpop.f32.mrb[0].mxu0
      %v1094 = vadd.f32 0.0, %v1093
      %v1095 = vpop.f32.mrb[0].mxu0
      %v1096 = vpop.f32.mrb[0].mxu0
      %v1097 = vadd.f32 0.0, %v1096
      %v1098 = vpop.f32.mrb[0].mxu0
      %1099 = vmatprep.mubr.bf16.mxu0 0
      %1100 = vmatmul.mubr.bf16.gmra.mrb[0].mxu0 %v991
      %v1101 = vpop.f32.mrb[0].mxu0
      %v1102 = vadd.f32 0.0, %v1101
      %v1103 = vpop.f32.mrb[0].mxu0
      %v1104 = vpop.f32.mrb[0].mxu0
      %v1105 = vadd.f32 0.0, %v1104
      %v1106 = vpop.f32.mrb[0].mxu0
      %1107 = vmatprep.mubr.bf16.mxu0 0
      %1108 = vmatmul.mubr.bf16.gmra.mrb[0].mxu0 %v994
      %v1109 = vpop.f32.mrb[0].mxu0
      %v1110 = vadd.f32 0.0, %v1109
      %v1111 = vpop.f32.mrb[0].mxu0
      %v1112 = vpop.f32.mrb[0].mxu0
      %v1113 = vadd.f32 0.0, %v1112
      %v1114 = vpop.f32.mrb[0].mxu0
      %1115 = vmatprep.mubr.bf16.mxu0 0
      %1116 = vmatmul.mubr.bf16.gmra.mrb[0].mxu0 %v997
      %v1117 = vpop.f32.mrb[0].mxu0
      %v1118 = vadd.f32 0.0, %v1117
      %v1119 = vpop.f32.mrb[0].mxu0
      %v1120 = vpop.f32.mrb[0].mxu0
      %v1121 = vadd.f32 0.0, %v1120
      %v1122 = vpop.f32.mrb[0].mxu0
      %1123 = vmatprep.mubr.bf16.mxu0 0
      %1124 = vmatmul.mubr.bf16.gmra.mrb[0].mxu0 %v1000
      %v1125 = vpop.f32.mrb[0].mxu0
      %v1126 = vadd.f32 0.0, %v1125
      %v1127 = vpop.f32.mrb[0].mxu0
      %v1128 = vpop.f32.mrb[0].mxu0
      %v1129 = vadd.f32 0.0, %v1128
      %v1130 = vpop.f32.mrb[0].mxu0
      %1131 = vmatprep.mubr.bf16.mxu0 0
      %1132 = vmatmul.mubr.bf16.gmra.mrb[0].mxu0 %v1003
      %v1133 = vpop.f32.mrb[0].mxu0
      %v1134 = vadd.f32 0.0, %v1133
      %v1135 = vpop.f32.mrb[0].mxu0
      %v1136 = vpop.f32.mrb[0].mxu0
      %v1137 = vadd.f32 0.0, %v1136
      %v1138 = vpop.f32.mrb[0].mxu0
      %1139 = vmatprep.mubr.bf16.mxu0 0
      %1140 = vmatmul.mubr.bf16.gmra.mrb[0].mxu0 %v1006
      %v1141 = vpop.f32.mrb[0].mxu0
      %v1142 = vadd.f32 0.0, %v1141
      %v1143 = vpop.f32.mrb[0].mxu0
      %v1144 = vpop.f32.mrb[0].mxu0
      %v1145 = vadd.f32 0.0, %v1144
      %v1146 = vpop.f32.mrb[0].mxu0
      %1147 = vmatprep.mubr.bf16.mxu0 0
      %1148 = vmatmul.mubr.bf16.gmra.mrb[0].mxu0 %v1009
      %v1149 = vpop.f32.mrb[0].mxu0
      %v1150 = vadd.f32 0.0, %v1149
      %v1151 = vpop.f32.mrb[0].mxu0
      %v1152 = vpop.f32.mrb[0].mxu0
      %v1153 = vadd.f32 0.0, %v1152
      %v1154 = vpop.f32.mrb[0].mxu0
      %1155 = vmatprep.mubr.bf16.mxu0 0
      %1156 = vmatmul.mubr.bf16.gmra.mrb[0].mxu0 %v1012
      %v1157 = vpop.f32.mrb[0].mxu0
      %v1158 = vadd.f32 0.0, %v1157
      %v1159 = vpop.f32.mrb[0].mxu0
      %v1160 = vpop.f32.mrb[0].mxu0
      %v1161 = vadd.f32 0.0, %v1160
      %v1162 = vpop.f32.mrb[0].mxu0
      %1163 = vmatprep.mubr.bf16.mxu0 0
      %1164 = vmatmul.mubr.bf16.gmra.mrb[0].mxu0 %v1015
      %v1165 = vpop.f32.mrb[0].mxu0
      %v1166 = vadd.f32 0.0, %v1165
      %v1167 = vpop.f32.mrb[0].mxu0
      %v1168 = vpop.f32.mrb[0].mxu0
      %v1169 = vadd.f32 0.0, %v1168
      %v1170 = vpop.f32.mrb[0].mxu0
      %1171 = vmatprep.mubr.bf16.mxu0 0
      %1172 = vmatmul.mubr.bf16.gmra.mrb[0].mxu0 %v1018
      %v1173 = vpop.f32.mrb[0].mxu0
      %v1174 = vadd.f32 0.0, %v1173
      %v1175 = vpop.f32.mrb[0].mxu0
      %v1176 = vpop.f32.mrb[0].mxu0
      %v1177 = vadd.f32 0.0, %v1176
      %v1178 = vpop.f32.mrb[0].mxu0
      %1179 = vmatprep.mubr.bf16.mxu0 0
      %1180 = vmatmul.mubr.bf16.gmra.mrb[0].mxu0 %v1021
      %v1181 = vpop.f32.mrb[0].mxu0
      %v1182 = vadd.f32 0.0, %v1181
      %v1183 = vpop.f32.mrb[0].mxu0
      %v1184 = vpop.f32.mrb[0].mxu0
      %v1185 = vadd.f32 0.0, %v1184
      %v1186 = vpop.f32.mrb[0].mxu0
      %1187 = vmatprep.mubr.bf16.mxu0 0
      %1188 = vmatmul.mubr.bf16.gmra.mrb[0].mxu0 %v1024
      %v1189 = vpop.f32.mrb[0].mxu0
      %v1190 = vadd.f32 0.0, %v1189
      %v1191 = vpop.f32.mrb[0].mxu0
      %v1192 = vpop.f32.mrb[0].mxu0
      %v1193 = vadd.f32 0.0, %v1192
      %v1194 = vpop.f32.mrb[0].mxu0
      %1195 = vmatprep.mubr.bf16.mxu0 0
      %1196 = vmatmul.mubr.bf16.gmra.mrb[0].mxu0 %v1027
      %v1197 = vpop.f32.mrb[0].mxu0
      %v1198 = vadd.f32 0.0, %v1197
      %v1199 = vpop.f32.mrb[0].mxu0
      %v1200 = vpop.f32.mrb[0].mxu0
      %v1201 = vadd.f32 0.0, %v1200
      %v1202 = vpop.f32.mrb[0].mxu0
      %1203 = vmatprep.mubr.bf16.mxu0 0
      %1204 = vmatmul.mubr.bf16.gmra.mrb[0].mxu0 %v1030
      %v1205 = vpop.f32.mrb[0].mxu0
      %v1206 = vadd.f32 0.0, %v1205
      %v1207 = vpop.f32.mrb[0].mxu0
      %v1208 = vpop.f32.mrb[0].mxu0
      %v1209 = vadd.f32 0.0, %v1208
      %v1210 = vpop.f32.mrb[0].mxu0
      %1211 = vdwg.mxu0
      %v1212 = vadd.f32 %v796, %v1070
      %v1213 = vadd.f32 %v799, %v1073
      %v1214 = vadd.f32 %v804, %v1078
      %v1215 = vadd.f32 %v807, %v1081
      %v1216 = vadd.f32 %v812, %v1086
      %v1217 = vadd.f32 %v815, %v1089
      %v1218 = vadd.f32 %v820, %v1094
      %v1219 = vadd.f32 %v823, %v1097
      %v1220 = vadd.f32 %v828, %v1102
      %v1221 = vadd.f32 %v831, %v1105
      %v1222 = vadd.f32 %v836, %v1110
      %v1223 = vadd.f32 %v839, %v1113
      %v1224 = vadd.f32 %v844, %v1118
      %v1225 = vadd.f32 %v847, %v1121
      %v1226 = vadd.f32 %v852, %v1126
      %v1227 = vadd.f32 %v855, %v1129
      %v1228 = vadd.f32 %v860, %v1134
      %v1229 = vadd.f32 %v863, %v1137
      %v1230 = vadd.f32 %v868, %v1142
      %v1231 = vadd.f32 %v871, %v1145
      %v1232 = vadd.f32 %v876, %v1150
      %v1233 = vadd.f32 %v879, %v1153
      %v1234 = vadd.f32 %v884, %v1158
      %v1235 = vadd.f32 %v887, %v1161
      %v1236 = vadd.f32 %v892, %v1166
      %v1237 = vadd.f32 %v895, %v1169
      %v1238 = vadd.f32 %v900, %v1174
      %v1239 = vadd.f32 %v903, %v1177
      %v1240 = vadd.f32 %v908, %v1182
      %v1241 = vadd.f32 %v911, %v1185
      %v1242 = vadd.f32 %v916, %v1190
      %v1243 = vadd.f32 %v919, %v1193
      %v1244 = vadd.f32 %v924, %v1198
      %v1245 = vadd.f32 %v927, %v1201
      %v1246 = vadd.f32 %v932, %v1206
      %v1247 = vadd.f32 %v935, %v1209
      %s1248 = scalar_lea.vmem %s1, 6
      %v1249 = vld [vmem:[%s1248] sm:$0x3]
      %v1252 = vunpack.c.l.b16 %v237
      %v1253 = vunpack.c.l.b16 %v238
      %v1254 = vpack.c.b16 %v1252, %v317
      %v1255 = vpack.c.b16 %v1253, %v1253
      %v1256 = vrot.slane %v1254, 1
      %v1257 = vsel %vm940, %v974, %v1256
      %v1258 = vrot.slane %v1255, 1
      %v1259 = vsel %vm940, %v1256, %v1258
      %v1261 = vsel %vm486, %v1257, 0
      %v1264 = vsel %vm486, %v1259, 0
      %v1267 = vsel %vm541, %v1249, 0
      %1269 = vmatprep.subr.bf16.mxu0 0
      %1270 = vmatpush1.bf16.msra.mxu0 %v1267
      %1271 = vmatprep.subr.bf16.mxu0 0
      %1272 = vmatpush1.bf16.msra.mxu0 0
      %1273 = vmatprep.subr.bf16.mxu0 0
      %1274 = vmatpush1.bf16.msra.mxu0 0
      %1275 = vmatprep.subr.bf16.mxu0 0
      %1276 = vmatpush1.bf16.msra.mxu0 0
      %1277 = vmatprep.subr.bf16.mxu0 0
      %1278 = vmatpush1.bf16.msra.mxu0 0
      %1279 = vmatprep.subr.bf16.mxu0 0
      %1280 = vmatpush1.bf16.msra.mxu0 0
      %1281 = vmatprep.subr.bf16.mxu0 0
      %1282 = vmatpush1.bf16.msra.mxu0 0
      %1283 = vmatprep.subr.bf16.mxu0 0
      %1284 = vmatpush1.bf16.msra.mxu0 0
      %1285 = vmatprep.subr.bf16.mxu0 0
      %1286 = vmatpush1.bf16.msra.mxu0 0
      %1287 = vmatprep.subr.bf16.mxu0 0
      %1288 = vmatpush1.bf16.msra.mxu0 0
      %1289 = vmatprep.subr.bf16.mxu0 0
      %1290 = vmatpush1.bf16.msra.mxu0 0
      %1291 = vmatprep.subr.bf16.mxu0 0
      %1292 = vmatpush1.bf16.msra.mxu0 0
      %1293 = vmatprep.subr.bf16.mxu0 0
      %1294 = vmatpush1.bf16.msra.mxu0 0
      %1295 = vmatprep.subr.bf16.mxu0 0
      %1296 = vmatpush1.bf16.msra.mxu0 0
      %1297 = vmatprep.subr.bf16.mxu0 0
      %1298 = vmatpush1.bf16.msra.mxu0 0
      %1299 = vmatprep.subr.bf16.mxu0 0
      %1300 = vmatpush1.bf16.msra.mxu0 0
      %1301 = vmatprep.mubr.bf16.mxu0 0
      %1302 = vmatmul.mubr.bf16.gmra.mrb[0].mxu0 %v982
      %v1303 = vpop.f32.mrb[0].mxu0
      %v1304 = vadd.f32 0.0, %v1303
      %v1305 = vpop.f32.mrb[0].mxu0
      %v1306 = vpop.f32.mrb[0].mxu0
      %v1307 = vadd.f32 0.0, %v1306
      %v1308 = vpop.f32.mrb[0].mxu0
      %1309 = vmatprep.mubr.bf16.mxu0 0
      %1310 = vmatmul.mubr.bf16.gmra.mrb[0].mxu0 %v985
      %v1311 = vpop.f32.mrb[0].mxu0
      %v1312 = vadd.f32 0.0, %v1311
      %v1313 = vpop.f32.mrb[0].mxu0
      %v1314 = vpop.f32.mrb[0].mxu0
      %v1315 = vadd.f32 0.0, %v1314
      %v1316 = vpop.f32.mrb[0].mxu0
      %1317 = vmatprep.mubr.bf16.mxu0 0
      %1318 = vmatmul.mubr.bf16.gmra.mrb[0].mxu0 %v988
      %v1319 = vpop.f32.mrb[0].mxu0
      %v1320 = vadd.f32 0.0, %v1319
      %v1321 = vpop.f32.mrb[0].mxu0
      %v1322 = vpop.f32.mrb[0].mxu0
      %v1323 = vadd.f32 0.0, %v1322
      %v1324 = vpop.f32.mrb[0].mxu0
      %1325 = vmatprep.mubr.bf16.mxu0 0
      %1326 = vmatmul.mubr.bf16.gmra.mrb[0].mxu0 %v991
      %v1327 = vpop.f32.mrb[0].mxu0
      %v1328 = vadd.f32 0.0, %v1327
      %v1329 = vpop.f32.mrb[0].mxu0
      %v1330 = vpop.f32.mrb[0].mxu0
      %v1331 = vadd.f32 0.0, %v1330
      %v1332 = vpop.f32.mrb[0].mxu0
      %1333 = vmatprep.mubr.bf16.mxu0 0
      %1334 = vmatmul.mubr.bf16.gmra.mrb[0].mxu0 %v994
      %v1335 = vpop.f32.mrb[0].mxu0
      %v1336 = vadd.f32 0.0, %v1335
      %v1337 = vpop.f32.mrb[0].mxu0
      %v1338 = vpop.f32.mrb[0].mxu0
      %v1339 = vadd.f32 0.0, %v1338
      %v1340 = vpop.f32.mrb[0].mxu0
      %1341 = vmatprep.mubr.bf16.mxu0 0
      %1342 = vmatmul.mubr.bf16.gmra.mrb[0].mxu0 %v997
      %v1343 = vpop.f32.mrb[0].mxu0
      %v1344 = vadd.f32 0.0, %v1343
      %v1345 = vpop.f32.mrb[0].mxu0
      %v1346 = vpop.f32.mrb[0].mxu0
      %v1347 = vadd.f32 0.0, %v1346
      %v1348 = vpop.f32.mrb[0].mxu0
      %1349 = vmatprep.mubr.bf16.mxu0 0
      %1350 = vmatmul.mubr.bf16.gmra.mrb[0].mxu0 %v1000
      %v1351 = vpop.f32.mrb[0].mxu0
      %v1352 = vadd.f32 0.0, %v1351
      %v1353 = vpop.f32.mrb[0].mxu0
      %v1354 = vpop.f32.mrb[0].mxu0
      %v1355 = vadd.f32 0.0, %v1354
      %v1356 = vpop.f32.mrb[0].mxu0
      %1357 = vmatprep.mubr.bf16.mxu0 0
      %1358 = vmatmul.mubr.bf16.gmra.mrb[0].mxu0 %v1003
      %v1359 = vpop.f32.mrb[0].mxu0
      %v1360 = vadd.f32 0.0, %v1359
      %v1361 = vpop.f32.mrb[0].mxu0
      %v1362 = vpop.f32.mrb[0].mxu0
      %v1363 = vadd.f32 0.0, %v1362
      %v1364 = vpop.f32.mrb[0].mxu0
      %1365 = vmatprep.mubr.bf16.mxu0 0
      %1366 = vmatmul.mubr.bf16.gmra.mrb[0].mxu0 %v1006
      %v1367 = vpop.f32.mrb[0].mxu0
      %v1368 = vadd.f32 0.0, %v1367
      %v1369 = vpop.f32.mrb[0].mxu0
      %v1370 = vpop.f32.mrb[0].mxu0
      %v1371 = vadd.f32 0.0, %v1370
      %v1372 = vpop.f32.mrb[0].mxu0
      %1373 = vmatprep.mubr.bf16.mxu0 0
      %1374 = vmatmul.mubr.bf16.gmra.mrb[0].mxu0 %v1009
      %v1375 = vpop.f32.mrb[0].mxu0
      %v1376 = vadd.f32 0.0, %v1375
      %v1377 = vpop.f32.mrb[0].mxu0
      %v1378 = vpop.f32.mrb[0].mxu0
      %v1379 = vadd.f32 0.0, %v1378
      %v1380 = vpop.f32.mrb[0].mxu0
      %1381 = vmatprep.mubr.bf16.mxu0 0
      %1382 = vmatmul.mubr.bf16.gmra.mrb[0].mxu0 %v1012
      %v1383 = vpop.f32.mrb[0].mxu0
      %v1384 = vadd.f32 0.0, %v1383
      %v1385 = vpop.f32.mrb[0].mxu0
      %v1386 = vpop.f32.mrb[0].mxu0
      %v1387 = vadd.f32 0.0, %v1386
      %v1388 = vpop.f32.mrb[0].mxu0
      %1389 = vmatprep.mubr.bf16.mxu0 0
      %1390 = vmatmul.mubr.bf16.gmra.mrb[0].mxu0 %v1015
      %v1391 = vpop.f32.mrb[0].mxu0
      %v1392 = vadd.f32 0.0, %v1391
      %v1393 = vpop.f32.mrb[0].mxu0
      %v1394 = vpop.f32.mrb[0].mxu0
      %v1395 = vadd.f32 0.0, %v1394
      %v1396 = vpop.f32.mrb[0].mxu0
      %1397 = vmatprep.mubr.bf16.mxu0 0
      %1398 = vmatmul.mubr.bf16.gmra.mrb[0].mxu0 %v1018
      %v1399 = vpop.f32.mrb[0].mxu0
      %v1400 = vadd.f32 0.0, %v1399
      %v1401 = vpop.f32.mrb[0].mxu0
      %v1402 = vpop.f32.mrb[0].mxu0
      %v1403 = vadd.f32 0.0, %v1402
      %v1404 = vpop.f32.mrb[0].mxu0
      %1405 = vmatprep.mubr.bf16.mxu0 0
      %1406 = vmatmul.mubr.bf16.gmra.mrb[0].mxu0 %v1021
      %v1407 = vpop.f32.mrb[0].mxu0
      %v1408 = vadd.f32 0.0, %v1407
      %v1409 = vpop.f32.mrb[0].mxu0
      %v1410 = vpop.f32.mrb[0].mxu0
      %v1411 = vadd.f32 0.0, %v1410
      %v1412 = vpop.f32.mrb[0].mxu0
      %1413 = vmatprep.mubr.bf16.mxu0 0
      %1414 = vmatmul.mubr.bf16.gmra.mrb[0].mxu0 %v1024
      %v1415 = vpop.f32.mrb[0].mxu0
      %v1416 = vadd.f32 0.0, %v1415
      %v1417 = vpop.f32.mrb[0].mxu0
      %v1418 = vpop.f32.mrb[0].mxu0
      %v1419 = vadd.f32 0.0, %v1418
      %v1420 = vpop.f32.mrb[0].mxu0
      %1421 = vmatprep.mubr.bf16.mxu0 0
      %1422 = vmatmul.mubr.bf16.gmra.mrb[0].mxu0 %v1027
      %v1423 = vpop.f32.mrb[0].mxu0
      %v1424 = vadd.f32 0.0, %v1423
      %v1425 = vpop.f32.mrb[0].mxu0
      %v1426 = vpop.f32.mrb[0].mxu0
      %v1427 = vadd.f32 0.0, %v1426
      %v1428 = vpop.f32.mrb[0].mxu0
      %1429 = vmatprep.mubr.bf16.mxu0 0
      %1430 = vmatmul.mubr.bf16.gmra.mrb[0].mxu0 %v1261
      %v1431 = vpop.f32.mrb[0].mxu0
      %v1432 = vadd.f32 0.0, %v1431
      %v1433 = vpop.f32.mrb[0].mxu0
      %v1434 = vpop.f32.mrb[0].mxu0
      %v1435 = vadd.f32 0.0, %v1434
      %v1436 = vpop.f32.mrb[0].mxu0
      %1437 = vmatprep.mubr.bf16.mxu0 0
      %1438 = vmatmul.mubr.bf16.gmra.mrb[0].mxu0 %v1264
      %v1439 = vpop.f32.mrb[0].mxu0
      %v1440 = vadd.f32 0.0, %v1439
      %v1441 = vpop.f32.mrb[0].mxu0
      %v1442 = vpop.f32.mrb[0].mxu0
      %v1443 = vadd.f32 0.0, %v1442
      %v1444 = vpop.f32.mrb[0].mxu0
      %1445 = vdwg.mxu0
      %v1446 = vadd.f32 %v1212, %v1304
      %v1447 = vadd.f32 %v1213, %v1307
      %v1448 = vadd.f32 %v1214, %v1312
      %v1449 = vadd.f32 %v1215, %v1315
      %v1450 = vadd.f32 %v1216, %v1320
      %v1451 = vadd.f32 %v1217, %v1323
      %v1452 = vadd.f32 %v1218, %v1328
      %v1453 = vadd.f32 %v1219, %v1331
      %v1454 = vadd.f32 %v1220, %v1336
      %v1455 = vadd.f32 %v1221, %v1339
      %v1456 = vadd.f32 %v1222, %v1344
      %v1457 = vadd.f32 %v1223, %v1347
      %v1458 = vadd.f32 %v1224, %v1352
      %v1459 = vadd.f32 %v1225, %v1355
      %v1460 = vadd.f32 %v1226, %v1360
      %v1461 = vadd.f32 %v1227, %v1363
      %v1462 = vadd.f32 %v1228, %v1368
      %v1463 = vadd.f32 %v1229, %v1371
      %v1464 = vadd.f32 %v1230, %v1376
      %v1465 = vadd.f32 %v1231, %v1379
      %v1466 = vadd.f32 %v1232, %v1384
      %v1467 = vadd.f32 %v1233, %v1387
      %v1468 = vadd.f32 %v1234, %v1392
      %v1469 = vadd.f32 %v1235, %v1395
      %v1470 = vadd.f32 %v1236, %v1400
      %v1471 = vadd.f32 %v1237, %v1403
      %v1472 = vadd.f32 %v1238, %v1408
      %v1473 = vadd.f32 %v1239, %v1411
      %v1474 = vadd.f32 %v1240, %v1416
      %v1475 = vadd.f32 %v1241, %v1419
      %v1476 = vadd.f32 %v1242, %v1424
      %v1477 = vadd.f32 %v1243, %v1427
      %v1478 = vadd.f32 %v1244, %v1432
      %v1479 = vadd.f32 %v1245, %v1435
      %v1480 = vadd.f32 %v1246, %v1440
      %v1481 = vadd.f32 %v1247, %v1443
      %s1482 = scalar_lea.vmem %s1, 8
      %v1483 = vld [vmem:[%s1482] sm:$0x3]
      %vm1484 = vsmask.f32 6400
      %v1485 = vrot.slane %v350, 1
      %v1486 = vrot.slane %v346, 2
      %v1487 = vor.u32 %v1485, %v1486
      %v1488 = vrot.slane %v358, 1
      %v1489 = vrot.slane %v354, 2
      %v1490 = vor.u32 %v1488, %v1489
      %v1491 = vsel %vm1484, %v1487, %v1490
      %v1492 = vrot.slane %v366, 1
      %v1493 = vrot.slane %v362, 2
      %v1494 = vor.u32 %v1492, %v1493
      %v1495 = vsel %vm1484, %v1490, %v1494
      %v1496 = vrot.slane %v374, 1
      %v1497 = vrot.slane %v370, 2
      %v1498 = vor.u32 %v1496, %v1497
      %v1499 = vsel %vm1484, %v1494, %v1498
      %v1500 = vrot.slane %v382, 1
      %v1501 = vrot.slane %v378, 2
      %v1502 = vor.u32 %v1500, %v1501
      %v1503 = vsel %vm1484, %v1498, %v1502
      %v1504 = vrot.slane %v390, 1
      %v1505 = vrot.slane %v386, 2
      %v1506 = vor.u32 %v1504, %v1505
      %v1507 = vsel %vm1484, %v1502, %v1506
      %v1508 = vrot.slane %v398, 1
      %v1509 = vrot.slane %v394, 2
      %v1510 = vor.u32 %v1508, %v1509
      %v1511 = vsel %vm1484, %v1506, %v1510
      %v1512 = vrot.slane %v406, 1
      %v1513 = vrot.slane %v402, 2
      %v1514 = vor.u32 %v1512, %v1513
      %v1515 = vsel %vm1484, %v1510, %v1514
      %v1516 = vrot.slane %v414, 1
      %v1517 = vrot.slane %v410, 2
      %v1518 = vor.u32 %v1516, %v1517
      %v1519 = vsel %vm1484, %v1514, %v1518
      %v1520 = vrot.slane %v422, 1
      %v1521 = vrot.slane %v418, 2
      %v1522 = vor.u32 %v1520, %v1521
      %v1523 = vsel %vm1484, %v1518, %v1522
      %v1524 = vrot.slane %v430, 1
      %v1525 = vrot.slane %v426, 2
      %v1526 = vor.u32 %v1524, %v1525
      %v1527 = vsel %vm1484, %v1522, %v1526
      %v1528 = vrot.slane %v438, 1
      %v1529 = vrot.slane %v434, 2
      %v1530 = vor.u32 %v1528, %v1529
      %v1531 = vsel %vm1484, %v1526, %v1530
      %v1532 = vrot.slane %v446, 1
      %v1533 = vrot.slane %v442, 2
      %v1534 = vor.u32 %v1532, %v1533
      %v1535 = vsel %vm1484, %v1530, %v1534
      %v1536 = vrot.slane %v454, 1
      %v1537 = vrot.slane %v450, 2
      %v1538 = vor.u32 %v1536, %v1537
      %v1539 = vsel %vm1484, %v1534, %v1538
      %v1540 = vrot.slane %v462, 1
      %v1541 = vrot.slane %v458, 2
      %v1542 = vor.u32 %v1540, %v1541
      %v1543 = vsel %vm1484, %v1538, %v1542
      %v1544 = vrot.slane %v470, 1
      %v1545 = vrot.slane %v466, 2
      %v1546 = vor.u32 %v1544, %v1545
      %v1547 = vsel %vm1484, %v1542, %v1546
      %v1548 = vrot.slane %v478, 1
      %v1549 = vrot.slane %v474, 2
      %v1550 = vor.u32 %v1548, %v1549
      %v1551 = vsel %vm1484, %v1546, %v1550
      %v1553 = vshrl.u32 %v1254, 16
      %v1555 = vrot.slane %v1553, 1
      %v1556 = vshll.u32 %v1254, 16
      %v1558 = vrot.slane %v1556, 2
      %v1559 = vor.u32 %v1555, %v1558
      %v1560 = vsel %vm1484, %v1550, %v1559
      %v1562 = vshrl.u32 %v1255, 16
      %v1564 = vrot.slane %v1562, 1
      %v1565 = vshll.u32 %v1255, 16
      %v1567 = vrot.slane %v1565, 2
      %v1568 = vor.u32 %v1564, %v1567
      %v1569 = vsel %vm1484, %v1559, %v1568
      %v1571 = vsel %vm486, %v1491, 0
      %v1574 = vsel %vm486, %v1495, 0
      %v1577 = vsel %vm486, %v1499, 0
      %v1580 = vsel %vm486, %v1503, 0
      %v1583 = vsel %vm486, %v1507, 0
      %v1586 = vsel %vm486, %v1511, 0
      %v1589 = vsel %vm486, %v1515, 0
      %v1592 = vsel %vm486, %v1519, 0
      %v1595 = vsel %vm486, %v1523, 0
      %v1598 = vsel %vm486, %v1527, 0
      %v1601 = vsel %vm486, %v1531, 0
      %v1604 = vsel %vm486, %v1535, 0
      %v1607 = vsel %vm486, %v1539, 0
      %v1610 = vsel %vm486, %v1543, 0
      %v1613 = vsel %vm486, %v1547, 0
      %v1616 = vsel %vm486, %v1551, 0
      %v1619 = vsel %vm486, %v1560, 0
      %v1622 = vsel %vm486, %v1569, 0
      %v1625 = vsel %vm541, %v1483, 0
      %1627 = vmatprep.subr.bf16.mxu0 0
      %1628 = vmatpush1.bf16.msra.mxu0 %v1625
      %1629 = vmatprep.subr.bf16.mxu0 0
      %1630 = vmatpush1.bf16.msra.mxu0 0
      %1631 = vmatprep.subr.bf16.mxu0 0
      %1632 = vmatpush1.bf16.msra.mxu0 0
      %1633 = vmatprep.subr.bf16.mxu0 0
      %1634 = vmatpush1.bf16.msra.mxu0 0
      %1635 = vmatprep.subr.bf16.mxu0 0
      %1636 = vmatpush1.bf16.msra.mxu0 0
      %1637 = vmatprep.subr.bf16.mxu0 0
      %1638 = vmatpush1.bf16.msra.mxu0 0
      %1639 = vmatprep.subr.bf16.mxu0 0
      %1640 = vmatpush1.bf16.msra.mxu0 0
      %1641 = vmatprep.subr.bf16.mxu0 0
      %1642 = vmatpush1.bf16.msra.mxu0 0
      %1643 = vmatprep.subr.bf16.mxu0 0
      %1644 = vmatpush1.bf16.msra.mxu0 0
      %1645 = vmatprep.subr.bf16.mxu0 0
      %1646 = vmatpush1.bf16.msra.mxu0 0
      %1647 = vmatprep.subr.bf16.mxu0 0
      %1648 = vmatpush1.bf16.msra.mxu0 0
      %1649 = vmatprep.subr.bf16.mxu0 0
      %1650 = vmatpush1.bf16.msra.mxu0 0
      %1651 = vmatprep.subr.bf16.mxu0 0
      %1652 = vmatpush1.bf16.msra.mxu0 0
      %1653 = vmatprep.subr.bf16.mxu0 0
      %1654 = vmatpush1.bf16.msra.mxu0 0
      %1655 = vmatprep.subr.bf16.mxu0 0
      %1656 = vmatpush1.bf16.msra.mxu0 0
      %1657 = vmatprep.subr.bf16.mxu0 0
      %1658 = vmatpush1.bf16.msra.mxu0 0
      %1659 = vmatprep.mubr.bf16.mxu0 0
      %1660 = vmatmul.mubr.bf16.gmra.mrb[0].mxu0 %v1571
      %v1661 = vpop.f32.mrb[0].mxu0
      %v1662 = vadd.f32 0.0, %v1661
      %v1663 = vpop.f32.mrb[0].mxu0
      %v1664 = vpop.f32.mrb[0].mxu0
      %v1665 = vadd.f32 0.0, %v1664
      %v1666 = vpop.f32.mrb[0].mxu0
      %1667 = vmatprep.mubr.bf16.mxu0 0
      %1668 = vmatmul.mubr.bf16.gmra.mrb[0].mxu0 %v1574
      %v1669 = vpop.f32.mrb[0].mxu0
      %v1670 = vadd.f32 0.0, %v1669
      %v1671 = vpop.f32.mrb[0].mxu0
      %v1672 = vpop.f32.mrb[0].mxu0
      %v1673 = vadd.f32 0.0, %v1672
      %v1674 = vpop.f32.mrb[0].mxu0
      %1675 = vmatprep.mubr.bf16.mxu0 0
      %1676 = vmatmul.mubr.bf16.gmra.mrb[0].mxu0 %v1577
      %v1677 = vpop.f32.mrb[0].mxu0
      %v1678 = vadd.f32 0.0, %v1677
      %v1679 = vpop.f32.mrb[0].mxu0
      %v1680 = vpop.f32.mrb[0].mxu0
      %v1681 = vadd.f32 0.0, %v1680
      %v1682 = vpop.f32.mrb[0].mxu0
      %1683 = vmatprep.mubr.bf16.mxu0 0
      %1684 = vmatmul.mubr.bf16.gmra.mrb[0].mxu0 %v1580
      %v1685 = vpop.f32.mrb[0].mxu0
      %v1686 = vadd.f32 0.0, %v1685
      %v1687 = vpop.f32.mrb[0].mxu0
      %v1688 = vpop.f32.mrb[0].mxu0
      %v1689 = vadd.f32 0.0, %v1688
      %v1690 = vpop.f32.mrb[0].mxu0
      %1691 = vmatprep.mubr.bf16.mxu0 0
      %1692 = vmatmul.mubr.bf16.gmra.mrb[0].mxu0 %v1583
      %v1693 = vpop.f32.mrb[0].mxu0
      %v1694 = vadd.f32 0.0, %v1693
      %v1695 = vpop.f32.mrb[0].mxu0
      %v1696 = vpop.f32.mrb[0].mxu0
      %v1697 = vadd.f32 0.0, %v1696
      %v1698 = vpop.f32.mrb[0].mxu0
      %1699 = vmatprep.mubr.bf16.mxu0 0
      %1700 = vmatmul.mubr.bf16.gmra.mrb[0].mxu0 %v1586
      %v1701 = vpop.f32.mrb[0].mxu0
      %v1702 = vadd.f32 0.0, %v1701
      %v1703 = vpop.f32.mrb[0].mxu0
      %v1704 = vpop.f32.mrb[0].mxu0
      %v1705 = vadd.f32 0.0, %v1704
      %v1706 = vpop.f32.mrb[0].mxu0
      %1707 = vmatprep.mubr.bf16.mxu0 0
      %1708 = vmatmul.mubr.bf16.gmra.mrb[0].mxu0 %v1589
      %v1709 = vpop.f32.mrb[0].mxu0
      %v1710 = vadd.f32 0.0, %v1709
      %v1711 = vpop.f32.mrb[0].mxu0
      %v1712 = vpop.f32.mrb[0].mxu0
      %v1713 = vadd.f32 0.0, %v1712
      %v1714 = vpop.f32.mrb[0].mxu0
      %1715 = vmatprep.mubr.bf16.mxu0 0
      %1716 = vmatmul.mubr.bf16.gmra.mrb[0].mxu0 %v1592
      %v1717 = vpop.f32.mrb[0].mxu0
      %v1718 = vadd.f32 0.0, %v1717
      %v1719 = vpop.f32.mrb[0].mxu0
      %v1720 = vpop.f32.mrb[0].mxu0
      %v1721 = vadd.f32 0.0, %v1720
      %v1722 = vpop.f32.mrb[0].mxu0
      %1723 = vmatprep.mubr.bf16.mxu0 0
      %1724 = vmatmul.mubr.bf16.gmra.mrb[0].mxu0 %v1595
      %v1725 = vpop.f32.mrb[0].mxu0
      %v1726 = vadd.f32 0.0, %v1725
      %v1727 = vpop.f32.mrb[0].mxu0
      %v1728 = vpop.f32.mrb[0].mxu0
      %v1729 = vadd.f32 0.0, %v1728
      %v1730 = vpop.f32.mrb[0].mxu0
      %1731 = vmatprep.mubr.bf16.mxu0 0
      %1732 = vmatmul.mubr.bf16.gmra.mrb[0].mxu0 %v1598
      %v1733 = vpop.f32.mrb[0].mxu0
      %v1734 = vadd.f32 0.0, %v1733
      %v1735 = vpop.f32.mrb[0].mxu0
      %v1736 = vpop.f32.mrb[0].mxu0
      %v1737 = vadd.f32 0.0, %v1736
      %v1738 = vpop.f32.mrb[0].mxu0
      %1739 = vmatprep.mubr.bf16.mxu0 0
      %1740 = vmatmul.mubr.bf16.gmra.mrb[0].mxu0 %v1601
      %v1741 = vpop.f32.mrb[0].mxu0
      %v1742 = vadd.f32 0.0, %v1741
      %v1743 = vpop.f32.mrb[0].mxu0
      %v1744 = vpop.f32.mrb[0].mxu0
      %v1745 = vadd.f32 0.0, %v1744
      %v1746 = vpop.f32.mrb[0].mxu0
      %1747 = vmatprep.mubr.bf16.mxu0 0
      %1748 = vmatmul.mubr.bf16.gmra.mrb[0].mxu0 %v1604
      %v1749 = vpop.f32.mrb[0].mxu0
      %v1750 = vadd.f32 0.0, %v1749
      %v1751 = vpop.f32.mrb[0].mxu0
      %v1752 = vpop.f32.mrb[0].mxu0
      %v1753 = vadd.f32 0.0, %v1752
      %v1754 = vpop.f32.mrb[0].mxu0
      %1755 = vmatprep.mubr.bf16.mxu0 0
      %1756 = vmatmul.mubr.bf16.gmra.mrb[0].mxu0 %v1607
      %v1757 = vpop.f32.mrb[0].mxu0
      %v1758 = vadd.f32 0.0, %v1757
      %v1759 = vpop.f32.mrb[0].mxu0
      %v1760 = vpop.f32.mrb[0].mxu0
      %v1761 = vadd.f32 0.0, %v1760
      %v1762 = vpop.f32.mrb[0].mxu0
      %1763 = vmatprep.mubr.bf16.mxu0 0
      %1764 = vmatmul.mubr.bf16.gmra.mrb[0].mxu0 %v1610
      %v1765 = vpop.f32.mrb[0].mxu0
      %v1766 = vadd.f32 0.0, %v1765
      %v1767 = vpop.f32.mrb[0].mxu0
      %v1768 = vpop.f32.mrb[0].mxu0
      %v1769 = vadd.f32 0.0, %v1768
      %v1770 = vpop.f32.mrb[0].mxu0
      %1771 = vmatprep.mubr.bf16.mxu0 0
      %1772 = vmatmul.mubr.bf16.gmra.mrb[0].mxu0 %v1613
      %v1773 = vpop.f32.mrb[0].mxu0
      %v1774 = vadd.f32 0.0, %v1773
      %v1775 = vpop.f32.mrb[0].mxu0
      %v1776 = vpop.f32.mrb[0].mxu0
      %v1777 = vadd.f32 0.0, %v1776
      %v1778 = vpop.f32.mrb[0].mxu0
      %1779 = vmatprep.mubr.bf16.mxu0 0
      %1780 = vmatmul.mubr.bf16.gmra.mrb[0].mxu0 %v1616
      %v1781 = vpop.f32.mrb[0].mxu0
      %v1782 = vadd.f32 0.0, %v1781
      %v1783 = vpop.f32.mrb[0].mxu0
      %v1784 = vpop.f32.mrb[0].mxu0
      %v1785 = vadd.f32 0.0, %v1784
      %v1786 = vpop.f32.mrb[0].mxu0
      %1787 = vmatprep.mubr.bf16.mxu0 0
      %1788 = vmatmul.mubr.bf16.gmra.mrb[0].mxu0 %v1619
      %v1789 = vpop.f32.mrb[0].mxu0
      %v1790 = vadd.f32 0.0, %v1789
      %v1791 = vpop.f32.mrb[0].mxu0
      %v1792 = vpop.f32.mrb[0].mxu0
      %v1793 = vadd.f32 0.0, %v1792
      %v1794 = vpop.f32.mrb[0].mxu0
      %1795 = vmatprep.mubr.bf16.mxu0 0
      %1796 = vmatmul.mubr.bf16.gmra.mrb[0].mxu0 %v1622
      %v1797 = vpop.f32.mrb[0].mxu0
      %v1798 = vadd.f32 0.0, %v1797
      %v1799 = vpop.f32.mrb[0].mxu0
      %v1800 = vpop.f32.mrb[0].mxu0
      %v1801 = vadd.f32 0.0, %v1800
      %v1802 = vpop.f32.mrb[0].mxu0
      %1803 = vdwg.mxu0
      %v1804 = vadd.f32 %v1446, %v1662
      %v1805 = vadd.f32 %v1447, %v1665
      %v1806 = vadd.f32 %v1448, %v1670
      %v1807 = vadd.f32 %v1449, %v1673
      %v1808 = vadd.f32 %v1450, %v1678
      %v1809 = vadd.f32 %v1451, %v1681
      %v1810 = vadd.f32 %v1452, %v1686
      %v1811 = vadd.f32 %v1453, %v1689
      %v1812 = vadd.f32 %v1454, %v1694
      %v1813 = vadd.f32 %v1455, %v1697
      %v1814 = vadd.f32 %v1456, %v1702
      %v1815 = vadd.f32 %v1457, %v1705
      %v1816 = vadd.f32 %v1458, %v1710
      %v1817 = vadd.f32 %v1459, %v1713
      %v1818 = vadd.f32 %v1460, %v1718
      %v1819 = vadd.f32 %v1461, %v1721
      %v1820 = vadd.f32 %v1462, %v1726
      %v1821 = vadd.f32 %v1463, %v1729
      %v1822 = vadd.f32 %v1464, %v1734
      %v1823 = vadd.f32 %v1465, %v1737
      %v1824 = vadd.f32 %v1466, %v1742
      %v1825 = vadd.f32 %v1467, %v1745
      %v1826 = vadd.f32 %v1468, %v1750
      %v1827 = vadd.f32 %v1469, %v1753
      %v1828 = vadd.f32 %v1470, %v1758
      %v1829 = vadd.f32 %v1471, %v1761
      %v1830 = vadd.f32 %v1472, %v1766
      %v1831 = vadd.f32 %v1473, %v1769
      %v1832 = vadd.f32 %v1474, %v1774
      %v1833 = vadd.f32 %v1475, %v1777
      %v1834 = vadd.f32 %v1476, %v1782
      %v1835 = vadd.f32 %v1477, %v1785
      %v1836 = vadd.f32 %v1478, %v1790
      %v1837 = vadd.f32 %v1479, %v1793
      %v1838 = vadd.f32 %v1480, %v1798
      %v1839 = vadd.f32 %v1481, %v1801
      %s1840 = scalar_lea.vmem %s1, 10
      %v1841 = vld [vmem:[%s1840] sm:$0x3]
      %vm1842 = vcmask 1045504
      %v1843 = vrot.slane %v319, 2
      %v1844 = vrot.slane %v320, 2
      %v1845 = vsel %vm1842, %v1843, %v1844
      %v1846 = vrot.slane %v321, 2
      %v1847 = vsel %vm1842, %v1844, %v1846
      %v1848 = vrot.slane %v322, 2
      %v1849 = vsel %vm1842, %v1846, %v1848
      %v1850 = vrot.slane %v323, 2
      %v1851 = vsel %vm1842, %v1848, %v1850
      %v1852 = vrot.slane %v324, 2
      %v1853 = vsel %vm1842, %v1850, %v1852
      %v1854 = vrot.slane %v325, 2
      %v1855 = vsel %vm1842, %v1852, %v1854
      %v1856 = vrot.slane %v326, 2
      %v1857 = vsel %vm1842, %v1854, %v1856
      %v1858 = vrot.slane %v327, 2
      %v1859 = vsel %vm1842, %v1856, %v1858
      %v1860 = vrot.slane %v328, 2
      %v1861 = vsel %vm1842, %v1858, %v1860
      %v1862 = vrot.slane %v329, 2
      %v1863 = vsel %vm1842, %v1860, %v1862
      %v1864 = vrot.slane %v330, 2
      %v1865 = vsel %vm1842, %v1862, %v1864
      %v1866 = vrot.slane %v331, 2
      %v1867 = vsel %vm1842, %v1864, %v1866
      %v1868 = vrot.slane %v332, 2
      %v1869 = vsel %vm1842, %v1866, %v1868
      %v1870 = vrot.slane %v333, 2
      %v1871 = vsel %vm1842, %v1868, %v1870
      %v1872 = vrot.slane %v334, 2
      %v1873 = vsel %vm1842, %v1870, %v1872
      %v1874 = vrot.slane %v335, 2
      %v1875 = vsel %vm1842, %v1872, %v1874
      %v1876 = vrot.slane %v1254, 2
      %v1877 = vsel %vm1842, %v1874, %v1876
      %v1878 = vrot.slane %v1255, 2
      %v1879 = vsel %vm1842, %v1876, %v1878
      %v1881 = vsel %vm486, %v1845, 0
      %v1884 = vsel %vm486, %v1847, 0
      %v1887 = vsel %vm486, %v1849, 0
      %v1890 = vsel %vm486, %v1851, 0
      %v1893 = vsel %vm486, %v1853, 0
      %v1896 = vsel %vm486, %v1855, 0
      %v1899 = vsel %vm486, %v1857, 0
      %v1902 = vsel %vm486, %v1859, 0
      %v1905 = vsel %vm486, %v1861, 0
      %v1908 = vsel %vm486, %v1863, 0
      %v1911 = vsel %vm486, %v1865, 0
      %v1914 = vsel %vm486, %v1867, 0
      %v1917 = vsel %vm486, %v1869, 0
      %v1920 = vsel %vm486, %v1871, 0
      %v1923 = vsel %vm486, %v1873, 0
      %v1926 = vsel %vm486, %v1875, 0
      %v1929 = vsel %vm486, %v1877, 0
      %v1932 = vsel %vm486, %v1879, 0
      %v1935 = vsel %vm541, %v1841, 0
      %1937 = vmatprep.subr.bf16.mxu0 0
      %1938 = vmatpush1.bf16.msra.mxu0 %v1935
      %1939 = vmatprep.subr.bf16.mxu0 0
      %1940 = vmatpush1.bf16.msra.mxu0 0
      %1941 = vmatprep.subr.bf16.mxu0 0
      %1942 = vmatpush1.bf16.msra.mxu0 0
      %1943 = vmatprep.subr.bf16.mxu0 0
      %1944 = vmatpush1.bf16.msra.mxu0 0
      %1945 = vmatprep.subr.bf16.mxu0 0
      %1946 = vmatpush1.bf16.msra.mxu0 0
      %1947 = vmatprep.subr.bf16.mxu0 0
      %1948 = vmatpush1.bf16.msra.mxu0 0
      %1949 = vmatprep.subr.bf16.mxu0 0
      %1950 = vmatpush1.bf16.msra.mxu0 0
      %1951 = vmatprep.subr.bf16.mxu0 0
      %1952 = vmatpush1.bf16.msra.mxu0 0
      %1953 = vmatprep.subr.bf16.mxu0 0
      %1954 = vmatpush1.bf16.msra.mxu0 0
      %1955 = vmatprep.subr.bf16.mxu0 0
      %1956 = vmatpush1.bf16.msra.mxu0 0
      %1957 = vmatprep.subr.bf16.mxu0 0
      %1958 = vmatpush1.bf16.msra.mxu0 0
      %1959 = vmatprep.subr.bf16.mxu0 0
      %1960 = vmatpush1.bf16.msra.mxu0 0
      %1961 = vmatprep.subr.bf16.mxu0 0
      %1962 = vmatpush1.bf16.msra.mxu0 0
      %1963 = vmatprep.subr.bf16.mxu0 0
      %1964 = vmatpush1.bf16.msra.mxu0 0
      %1965 = vmatprep.subr.bf16.mxu0 0
      %1966 = vmatpush1.bf16.msra.mxu0 0
      %1967 = vmatprep.subr.bf16.mxu0 0
      %1968 = vmatpush1.bf16.msra.mxu0 0
      %1969 = vmatprep.mubr.bf16.mxu0 0
      %1970 = vmatmul.mubr.bf16.gmra.mrb[0].mxu0 %v1881
      %v1971 = vpop.f32.mrb[0].mxu0
      %v1972 = vadd.f32 0.0, %v1971
      %v1973 = vpop.f32.mrb[0].mxu0
      %v1974 = vpop.f32.mrb[0].mxu0
      %v1975 = vadd.f32 0.0, %v1974
      %v1976 = vpop.f32.mrb[0].mxu0
      %1977 = vmatprep.mubr.bf16.mxu0 0
      %1978 = vmatmul.mubr.bf16.gmra.mrb[0].mxu0 %v1884
      %v1979 = vpop.f32.mrb[0].mxu0
      %v1980 = vadd.f32 0.0, %v1979
      %v1981 = vpop.f32.mrb[0].mxu0
      %v1982 = vpop.f32.mrb[0].mxu0
      %v1983 = vadd.f32 0.0, %v1982
      %v1984 = vpop.f32.mrb[0].mxu0
      %1985 = vmatprep.mubr.bf16.mxu0 0
      %1986 = vmatmul.mubr.bf16.gmra.mrb[0].mxu0 %v1887
      %v1987 = vpop.f32.mrb[0].mxu0
      %v1988 = vadd.f32 0.0, %v1987
      %v1989 = vpop.f32.mrb[0].mxu0
      %v1990 = vpop.f32.mrb[0].mxu0
      %v1991 = vadd.f32 0.0, %v1990
      %v1992 = vpop.f32.mrb[0].mxu0
      %1993 = vmatprep.mubr.bf16.mxu0 0
      %1994 = vmatmul.mubr.bf16.gmra.mrb[0].mxu0 %v1890
      %v1995 = vpop.f32.mrb[0].mxu0
      %v1996 = vadd.f32 0.0, %v1995
      %v1997 = vpop.f32.mrb[0].mxu0
      %v1998 = vpop.f32.mrb[0].mxu0
      %v1999 = vadd.f32 0.0, %v1998
      %v2000 = vpop.f32.mrb[0].mxu0
      %2001 = vmatprep.mubr.bf16.mxu0 0
      %2002 = vmatmul.mubr.bf16.gmra.mrb[0].mxu0 %v1893
      %v2003 = vpop.f32.mrb[0].mxu0
      %v2004 = vadd.f32 0.0, %v2003
      %v2005 = vpop.f32.mrb[0].mxu0
      %v2006 = vpop.f32.mrb[0].mxu0
      %v2007 = vadd.f32 0.0, %v2006
      %v2008 = vpop.f32.mrb[0].mxu0
      %2009 = vmatprep.mubr.bf16.mxu0 0
      %2010 = vmatmul.mubr.bf16.gmra.mrb[0].mxu0 %v1896
      %v2011 = vpop.f32.mrb[0].mxu0
      %v2012 = vadd.f32 0.0, %v2011
      %v2013 = vpop.f32.mrb[0].mxu0
      %v2014 = vpop.f32.mrb[0].mxu0
      %v2015 = vadd.f32 0.0, %v2014
      %v2016 = vpop.f32.mrb[0].mxu0
      %2017 = vmatprep.mubr.bf16.mxu0 0
      %2018 = vmatmul.mubr.bf16.gmra.mrb[0].mxu0 %v1899
      %v2019 = vpop.f32.mrb[0].mxu0
      %v2020 = vadd.f32 0.0, %v2019
      %v2021 = vpop.f32.mrb[0].mxu0
      %v2022 = vpop.f32.mrb[0].mxu0
      %v2023 = vadd.f32 0.0, %v2022
      %v2024 = vpop.f32.mrb[0].mxu0
      %2025 = vmatprep.mubr.bf16.mxu0 0
      %2026 = vmatmul.mubr.bf16.gmra.mrb[0].mxu0 %v1902
      %v2027 = vpop.f32.mrb[0].mxu0
      %v2028 = vadd.f32 0.0, %v2027
      %v2029 = vpop.f32.mrb[0].mxu0
      %v2030 = vpop.f32.mrb[0].mxu0
      %v2031 = vadd.f32 0.0, %v2030
      %v2032 = vpop.f32.mrb[0].mxu0
      %2033 = vmatprep.mubr.bf16.mxu0 0
      %2034 = vmatmul.mubr.bf16.gmra.mrb[0].mxu0 %v1905
      %v2035 = vpop.f32.mrb[0].mxu0
      %v2036 = vadd.f32 0.0, %v2035
      %v2037 = vpop.f32.mrb[0].mxu0
      %v2038 = vpop.f32.mrb[0].mxu0
      %v2039 = vadd.f32 0.0, %v2038
      %v2040 = vpop.f32.mrb[0].mxu0
      %2041 = vmatprep.mubr.bf16.mxu0 0
      %2042 = vmatmul.mubr.bf16.gmra.mrb[0].mxu0 %v1908
      %v2043 = vpop.f32.mrb[0].mxu0
      %v2044 = vadd.f32 0.0, %v2043
      %v2045 = vpop.f32.mrb[0].mxu0
      %v2046 = vpop.f32.mrb[0].mxu0
      %v2047 = vadd.f32 0.0, %v2046
      %v2048 = vpop.f32.mrb[0].mxu0
      %2049 = vmatprep.mubr.bf16.mxu0 0
      %2050 = vmatmul.mubr.bf16.gmra.mrb[0].mxu0 %v1911
      %v2051 = vpop.f32.mrb[0].mxu0
      %v2052 = vadd.f32 0.0, %v2051
      %v2053 = vpop.f32.mrb[0].mxu0
      %v2054 = vpop.f32.mrb[0].mxu0
      %v2055 = vadd.f32 0.0, %v2054
      %v2056 = vpop.f32.mrb[0].mxu0
      %2057 = vmatprep.mubr.bf16.mxu0 0
      %2058 = vmatmul.mubr.bf16.gmra.mrb[0].mxu0 %v1914
      %v2059 = vpop.f32.mrb[0].mxu0
      %v2060 = vadd.f32 0.0, %v2059
      %v2061 = vpop.f32.mrb[0].mxu0
      %v2062 = vpop.f32.mrb[0].mxu0
      %v2063 = vadd.f32 0.0, %v2062
      %v2064 = vpop.f32.mrb[0].mxu0
      %2065 = vmatprep.mubr.bf16.mxu0 0
      %2066 = vmatmul.mubr.bf16.gmra.mrb[0].mxu0 %v1917
      %v2067 = vpop.f32.mrb[0].mxu0
      %v2068 = vadd.f32 0.0, %v2067
      %v2069 = vpop.f32.mrb[0].mxu0
      %v2070 = vpop.f32.mrb[0].mxu0
      %v2071 = vadd.f32 0.0, %v2070
      %v2072 = vpop.f32.mrb[0].mxu0
      %2073 = vmatprep.mubr.bf16.mxu0 0
      %2074 = vmatmul.mubr.bf16.gmra.mrb[0].mxu0 %v1920
      %v2075 = vpop.f32.mrb[0].mxu0
      %v2076 = vadd.f32 0.0, %v2075
      %v2077 = vpop.f32.mrb[0].mxu0
      %v2078 = vpop.f32.mrb[0].mxu0
      %v2079 = vadd.f32 0.0, %v2078
      %v2080 = vpop.f32.mrb[0].mxu0
      %2081 = vmatprep.mubr.bf16.mxu0 0
      %2082 = vmatmul.mubr.bf16.gmra.mrb[0].mxu0 %v1923
      %v2083 = vpop.f32.mrb[0].mxu0
      %v2084 = vadd.f32 0.0, %v2083
      %v2085 = vpop.f32.mrb[0].mxu0
      %v2086 = vpop.f32.mrb[0].mxu0
      %v2087 = vadd.f32 0.0, %v2086
      %v2088 = vpop.f32.mrb[0].mxu0
      %2089 = vmatprep.mubr.bf16.mxu0 0
      %2090 = vmatmul.mubr.bf16.gmra.mrb[0].mxu0 %v1926
      %v2091 = vpop.f32.mrb[0].mxu0
      %v2092 = vadd.f32 0.0, %v2091
      %v2093 = vpop.f32.mrb[0].mxu0
      %v2094 = vpop.f32.mrb[0].mxu0
      %v2095 = vadd.f32 0.0, %v2094
      %v2096 = vpop.f32.mrb[0].mxu0
      %2097 = vmatprep.mubr.bf16.mxu0 0
      %2098 = vmatmul.mubr.bf16.gmra.mrb[0].mxu0 %v1929
      %v2099 = vpop.f32.mrb[0].mxu0
      %v2100 = vadd.f32 0.0, %v2099
      %v2101 = vpop.f32.mrb[0].mxu0
      %v2102 = vpop.f32.mrb[0].mxu0
      %v2103 = vadd.f32 0.0, %v2102
      %v2104 = vpop.f32.mrb[0].mxu0
      %2105 = vmatprep.mubr.bf16.mxu0 0
      %2106 = vmatmul.mubr.bf16.gmra.mrb[0].mxu0 %v1932
      %v2107 = vpop.f32.mrb[0].mxu0
      %v2108 = vadd.f32 0.0, %v2107
      %v2109 = vpop.f32.mrb[0].mxu0
      %v2110 = vpop.f32.mrb[0].mxu0
      %v2111 = vadd.f32 0.0, %v2110
      %v2112 = vpop.f32.mrb[0].mxu0
      %2113 = vdwg.mxu0
      %v2114 = vadd.f32 %v1804, %v1972
      %v2115 = vadd.f32 %v1805, %v1975
      %v2116 = vadd.f32 %v1806, %v1980
      %v2117 = vadd.f32 %v1807, %v1983
      %v2118 = vadd.f32 %v1808, %v1988
      %v2119 = vadd.f32 %v1809, %v1991
      %v2120 = vadd.f32 %v1810, %v1996
      %v2121 = vadd.f32 %v1811, %v1999
      %v2122 = vadd.f32 %v1812, %v2004
      %v2123 = vadd.f32 %v1813, %v2007
      %v2124 = vadd.f32 %v1814, %v2012
      %v2125 = vadd.f32 %v1815, %v2015
      %v2126 = vadd.f32 %v1816, %v2020
      %v2127 = vadd.f32 %v1817, %v2023
      %v2128 = vadd.f32 %v1818, %v2028
      %v2129 = vadd.f32 %v1819, %v2031
      %v2130 = vadd.f32 %v1820, %v2036
      %v2131 = vadd.f32 %v1821, %v2039
      %v2132 = vadd.f32 %v1822, %v2044
      %v2133 = vadd.f32 %v1823, %v2047
      %v2134 = vadd.f32 %v1824, %v2052
      %v2135 = vadd.f32 %v1825, %v2055
      %v2136 = vadd.f32 %v1826, %v2060
      %v2137 = vadd.f32 %v1827, %v2063
      %v2138 = vadd.f32 %v1828, %v2068
      %v2139 = vadd.f32 %v1829, %v2071
      %v2140 = vadd.f32 %v1830, %v2076
      %v2141 = vadd.f32 %v1831, %v2079
      %v2142 = vadd.f32 %v1832, %v2084
      %v2143 = vadd.f32 %v1833, %v2087
      %v2144 = vadd.f32 %v1834, %v2092
      %v2145 = vadd.f32 %v1835, %v2095
      %v2146 = vadd.f32 %v1836, %v2100
      %v2147 = vadd.f32 %v1837, %v2103
      %v2148 = vadd.f32 %v1838, %v2108
      %v2149 = vadd.f32 %v1839, %v2111
      %s2150 = scalar_lea.vmem %s1, 12
      %v2151 = vld [vmem:[%s2150] sm:$0x3]
      %v2154 = vunpack.c.l.b16 %v239
      %v2155 = vunpack.c.l.b16 %v240
      %v2156 = vpack.c.b16 %v2154, %v1253
      %v2157 = vpack.c.b16 %v2155, %v2155
      %v2158 = vrot.slane %v2156, 2
      %v2159 = vsel %vm1842, %v1876, %v2158
      %v2160 = vrot.slane %v2157, 2
      %v2161 = vsel %vm1842, %v2158, %v2160
      %v2163 = vsel %vm486, %v2159, 0
      %v2166 = vsel %vm486, %v2161, 0
      %v2169 = vsel %vm541, %v2151, 0
      %2171 = vmatprep.subr.bf16.mxu0 0
      %2172 = vmatpush1.bf16.msra.mxu0 %v2169
      %2173 = vmatprep.subr.bf16.mxu0 0
      %2174 = vmatpush1.bf16.msra.mxu0 0
      %2175 = vmatprep.subr.bf16.mxu0 0
      %2176 = vmatpush1.bf16.msra.mxu0 0
      %2177 = vmatprep.subr.bf16.mxu0 0
      %2178 = vmatpush1.bf16.msra.mxu0 0
      %2179 = vmatprep.subr.bf16.mxu0 0
      %2180 = vmatpush1.bf16.msra.mxu0 0
      %2181 = vmatprep.subr.bf16.mxu0 0
      %2182 = vmatpush1.bf16.msra.mxu0 0
      %2183 = vmatprep.subr.bf16.mxu0 0
      %2184 = vmatpush1.bf16.msra.mxu0 0
      %2185 = vmatprep.subr.bf16.mxu0 0
      %2186 = vmatpush1.bf16.msra.mxu0 0
      %2187 = vmatprep.subr.bf16.mxu0 0
      %2188 = vmatpush1.bf16.msra.mxu0 0
      %2189 = vmatprep.subr.bf16.mxu0 0
      %2190 = vmatpush1.bf16.msra.mxu0 0
      %2191 = vmatprep.subr.bf16.mxu0 0
      %2192 = vmatpush1.bf16.msra.mxu0 0
      %2193 = vmatprep.subr.bf16.mxu0 0
      %2194 = vmatpush1.bf16.msra.mxu0 0
      %2195 = vmatprep.subr.bf16.mxu0 0
      %2196 = vmatpush1.bf16.msra.mxu0 0
      %2197 = vmatprep.subr.bf16.mxu0 0
      %2198 = vmatpush1.bf16.msra.mxu0 0
      %2199 = vmatprep.subr.bf16.mxu0 0
      %2200 = vmatpush1.bf16.msra.mxu0 0
      %2201 = vmatprep.subr.bf16.mxu0 0
      %2202 = vmatpush1.bf16.msra.mxu0 0
      %2203 = vmatprep.mubr.bf16.mxu0 0
      %2204 = vmatmul.mubr.bf16.gmra.mrb[0].mxu0 %v1884
      %v2205 = vpop.f32.mrb[0].mxu0
      %v2206 = vadd.f32 0.0, %v2205
      %v2207 = vpop.f32.mrb[0].mxu0
      %v2208 = vpop.f32.mrb[0].mxu0
      %v2209 = vadd.f32 0.0, %v2208
      %v2210 = vpop.f32.mrb[0].mxu0
      %2211 = vmatprep.mubr.bf16.mxu0 0
      %2212 = vmatmul.mubr.bf16.gmra.mrb[0].mxu0 %v1887
      %v2213 = vpop.f32.mrb[0].mxu0
      %v2214 = vadd.f32 0.0, %v2213
      %v2215 = vpop.f32.mrb[0].mxu0
      %v2216 = vpop.f32.mrb[0].mxu0
      %v2217 = vadd.f32 0.0, %v2216
      %v2218 = vpop.f32.mrb[0].mxu0
      %2219 = vmatprep.mubr.bf16.mxu0 0
      %2220 = vmatmul.mubr.bf16.gmra.mrb[0].mxu0 %v1890
      %v2221 = vpop.f32.mrb[0].mxu0
      %v2222 = vadd.f32 0.0, %v2221
      %v2223 = vpop.f32.mrb[0].mxu0
      %v2224 = vpop.f32.mrb[0].mxu0
      %v2225 = vadd.f32 0.0, %v2224
      %v2226 = vpop.f32.mrb[0].mxu0
      %2227 = vmatprep.mubr.bf16.mxu0 0
      %2228 = vmatmul.mubr.bf16.gmra.mrb[0].mxu0 %v1893
      %v2229 = vpop.f32.mrb[0].mxu0
      %v2230 = vadd.f32 0.0, %v2229
      %v2231 = vpop.f32.mrb[0].mxu0
      %v2232 = vpop.f32.mrb[0].mxu0
      %v2233 = vadd.f32 0.0, %v2232
      %v2234 = vpop.f32.mrb[0].mxu0
      %2235 = vmatprep.mubr.bf16.mxu0 0
      %2236 = vmatmul.mubr.bf16.gmra.mrb[0].mxu0 %v1896
      %v2237 = vpop.f32.mrb[0].mxu0
      %v2238 = vadd.f32 0.0, %v2237
      %v2239 = vpop.f32.mrb[0].mxu0
      %v2240 = vpop.f32.mrb[0].mxu0
      %v2241 = vadd.f32 0.0, %v2240
      %v2242 = vpop.f32.mrb[0].mxu0
      %2243 = vmatprep.mubr.bf16.mxu0 0
      %2244 = vmatmul.mubr.bf16.gmra.mrb[0].mxu0 %v1899
      %v2245 = vpop.f32.mrb[0].mxu0
      %v2246 = vadd.f32 0.0, %v2245
      %v2247 = vpop.f32.mrb[0].mxu0
      %v2248 = vpop.f32.mrb[0].mxu0
      %v2249 = vadd.f32 0.0, %v2248
      %v2250 = vpop.f32.mrb[0].mxu0
      %2251 = vmatprep.mubr.bf16.mxu0 0
      %2252 = vmatmul.mubr.bf16.gmra.mrb[0].mxu0 %v1902
      %v2253 = vpop.f32.mrb[0].mxu0
      %v2254 = vadd.f32 0.0, %v2253
      %v2255 = vpop.f32.mrb[0].mxu0
      %v2256 = vpop.f32.mrb[0].mxu0
      %v2257 = vadd.f32 0.0, %v2256
      %v2258 = vpop.f32.mrb[0].mxu0
      %2259 = vmatprep.mubr.bf16.mxu0 0
      %2260 = vmatmul.mubr.bf16.gmra.mrb[0].mxu0 %v1905
      %v2261 = vpop.f32.mrb[0].mxu0
      %v2262 = vadd.f32 0.0, %v2261
      %v2263 = vpop.f32.mrb[0].mxu0
      %v2264 = vpop.f32.mrb[0].mxu0
      %v2265 = vadd.f32 0.0, %v2264
      %v2266 = vpop.f32.mrb[0].mxu0
      %2267 = vmatprep.mubr.bf16.mxu0 0
      %2268 = vmatmul.mubr.bf16.gmra.mrb[0].mxu0 %v1908
      %v2269 = vpop.f32.mrb[0].mxu0
      %v2270 = vadd.f32 0.0, %v2269
      %v2271 = vpop.f32.mrb[0].mxu0
      %v2272 = vpop.f32.mrb[0].mxu0
      %v2273 = vadd.f32 0.0, %v2272
      %v2274 = vpop.f32.mrb[0].mxu0
      %2275 = vmatprep.mubr.bf16.mxu0 0
      %2276 = vmatmul.mubr.bf16.gmra.mrb[0].mxu0 %v1911
      %v2277 = vpop.f32.mrb[0].mxu0
      %v2278 = vadd.f32 0.0, %v2277
      %v2279 = vpop.f32.mrb[0].mxu0
      %v2280 = vpop.f32.mrb[0].mxu0
      %v2281 = vadd.f32 0.0, %v2280
      %v2282 = vpop.f32.mrb[0].mxu0
      %2283 = vmatprep.mubr.bf16.mxu0 0
      %2284 = vmatmul.mubr.bf16.gmra.mrb[0].mxu0 %v1914
      %v2285 = vpop.f32.mrb[0].mxu0
      %v2286 = vadd.f32 0.0, %v2285
      %v2287 = vpop.f32.mrb[0].mxu0
      %v2288 = vpop.f32.mrb[0].mxu0
      %v2289 = vadd.f32 0.0, %v2288
      %v2290 = vpop.f32.mrb[0].mxu0
      %2291 = vmatprep.mubr.bf16.mxu0 0
      %2292 = vmatmul.mubr.bf16.gmra.mrb[0].mxu0 %v1917
      %v2293 = vpop.f32.mrb[0].mxu0
      %v2294 = vadd.f32 0.0, %v2293
      %v2295 = vpop.f32.mrb[0].mxu0
      %v2296 = vpop.f32.mrb[0].mxu0
      %v2297 = vadd.f32 0.0, %v2296
      %v2298 = vpop.f32.mrb[0].mxu0
      %2299 = vmatprep.mubr.bf16.mxu0 0
      %2300 = vmatmul.mubr.bf16.gmra.mrb[0].mxu0 %v1920
      %v2301 = vpop.f32.mrb[0].mxu0
      %v2302 = vadd.f32 0.0, %v2301
      %v2303 = vpop.f32.mrb[0].mxu0
      %v2304 = vpop.f32.mrb[0].mxu0
      %v2305 = vadd.f32 0.0, %v2304
      %v2306 = vpop.f32.mrb[0].mxu0
      %2307 = vmatprep.mubr.bf16.mxu0 0
      %2308 = vmatmul.mubr.bf16.gmra.mrb[0].mxu0 %v1923
      %v2309 = vpop.f32.mrb[0].mxu0
      %v2310 = vadd.f32 0.0, %v2309
      %v2311 = vpop.f32.mrb[0].mxu0
      %v2312 = vpop.f32.mrb[0].mxu0
      %v2313 = vadd.f32 0.0, %v2312
      %v2314 = vpop.f32.mrb[0].mxu0
      %2315 = vmatprep.mubr.bf16.mxu0 0
      %2316 = vmatmul.mubr.bf16.gmra.mrb[0].mxu0 %v1926
      %v2317 = vpop.f32.mrb[0].mxu0
      %v2318 = vadd.f32 0.0, %v2317
      %v2319 = vpop.f32.mrb[0].mxu0
      %v2320 = vpop.f32.mrb[0].mxu0
      %v2321 = vadd.f32 0.0, %v2320
      %v2322 = vpop.f32.mrb[0].mxu0
      %2323 = vmatprep.mubr.bf16.mxu0 0
      %2324 = vmatmul.mubr.bf16.gmra.mrb[0].mxu0 %v1929
      %v2325 = vpop.f32.mrb[0].mxu0
      %v2326 = vadd.f32 0.0, %v2325
      %v2327 = vpop.f32.mrb[0].mxu0
      %v2328 = vpop.f32.mrb[0].mxu0
      %v2329 = vadd.f32 0.0, %v2328
      %v2330 = vpop.f32.mrb[0].mxu0
      %2331 = vmatprep.mubr.bf16.mxu0 0
      %2332 = vmatmul.mubr.bf16.gmra.mrb[0].mxu0 %v2163
      %v2333 = vpop.f32.mrb[0].mxu0
      %v2334 = vadd.f32 0.0, %v2333
      %v2335 = vpop.f32.mrb[0].mxu0
      %v2336 = vpop.f32.mrb[0].mxu0
      %v2337 = vadd.f32 0.0, %v2336
      %v2338 = vpop.f32.mrb[0].mxu0
      %2339 = vmatprep.mubr.bf16.mxu0 0
      %2340 = vmatmul.mubr.bf16.gmra.mrb[0].mxu0 %v2166
      %v2341 = vpop.f32.mrb[0].mxu0
      %v2342 = vadd.f32 0.0, %v2341
      %v2343 = vpop.f32.mrb[0].mxu0
      %v2344 = vpop.f32.mrb[0].mxu0
      %v2345 = vadd.f32 0.0, %v2344
      %v2346 = vpop.f32.mrb[0].mxu0
      %2347 = vdwg.mxu0
      %v2348 = vadd.f32 %v2114, %v2206
      %v2349 = vadd.f32 %v2115, %v2209
      %v2350 = vadd.f32 %v2116, %v2214
      %v2351 = vadd.f32 %v2117, %v2217
      %v2352 = vadd.f32 %v2118, %v2222
      %v2353 = vadd.f32 %v2119, %v2225
      %v2354 = vadd.f32 %v2120, %v2230
      %v2355 = vadd.f32 %v2121, %v2233
      %v2356 = vadd.f32 %v2122, %v2238
      %v2357 = vadd.f32 %v2123, %v2241
      %v2358 = vadd.f32 %v2124, %v2246
      %v2359 = vadd.f32 %v2125, %v2249
      %v2360 = vadd.f32 %v2126, %v2254
      %v2361 = vadd.f32 %v2127, %v2257
      %v2362 = vadd.f32 %v2128, %v2262
      %v2363 = vadd.f32 %v2129, %v2265
      %v2364 = vadd.f32 %v2130, %v2270
      %v2365 = vadd.f32 %v2131, %v2273
      %v2366 = vadd.f32 %v2132, %v2278
      %v2367 = vadd.f32 %v2133, %v2281
      %v2368 = vadd.f32 %v2134, %v2286
      %v2369 = vadd.f32 %v2135, %v2289
      %v2370 = vadd.f32 %v2136, %v2294
      %v2371 = vadd.f32 %v2137, %v2297
      %v2372 = vadd.f32 %v2138, %v2302
      %v2373 = vadd.f32 %v2139, %v2305
      %v2374 = vadd.f32 %v2140, %v2310
      %v2375 = vadd.f32 %v2141, %v2313
      %v2376 = vadd.f32 %v2142, %v2318
      %v2377 = vadd.f32 %v2143, %v2321
      %v2378 = vadd.f32 %v2144, %v2326
      %v2379 = vadd.f32 %v2145, %v2329
      %v2380 = vadd.f32 %v2146, %v2334
      %v2381 = vadd.f32 %v2147, %v2337
      %v2382 = vadd.f32 %v2148, %v2342
      %v2383 = vadd.f32 %v2149, %v2345
      %s2384 = scalar_lea.vmem %s1, 14
      %v2385 = vld [vmem:[%s2384] sm:$0x3]
      %vm2386 = vsmask.f32 5376
      %v2387 = vrot.slane %v358, 2
      %v2388 = vrot.slane %v354, 3
      %v2389 = vor.u32 %v2387, %v2388
      %v2390 = vrot.slane %v366, 2
      %v2391 = vrot.slane %v362, 3
      %v2392 = vor.u32 %v2390, %v2391
      %v2393 = vsel %vm2386, %v2389, %v2392
      %v2394 = vrot.slane %v374, 2
      %v2395 = vrot.slane %v370, 3
      %v2396 = vor.u32 %v2394, %v2395
      %v2397 = vsel %vm2386, %v2392, %v2396
      %v2398 = vrot.slane %v382, 2
      %v2399 = vrot.slane %v378, 3
      %v2400 = vor.u32 %v2398, %v2399
      %v2401 = vsel %vm2386, %v2396, %v2400
      %v2402 = vrot.slane %v390, 2
      %v2403 = vrot.slane %v386, 3
      %v2404 = vor.u32 %v2402, %v2403
      %v2405 = vsel %vm2386, %v2400, %v2404
      %v2406 = vrot.slane %v398, 2
      %v2407 = vrot.slane %v394, 3
      %v2408 = vor.u32 %v2406, %v2407
      %v2409 = vsel %vm2386, %v2404, %v2408
      %v2410 = vrot.slane %v406, 2
      %v2411 = vrot.slane %v402, 3
      %v2412 = vor.u32 %v2410, %v2411
      %v2413 = vsel %vm2386, %v2408, %v2412
      %v2414 = vrot.slane %v414, 2
      %v2415 = vrot.slane %v410, 3
      %v2416 = vor.u32 %v2414, %v2415
      %v2417 = vsel %vm2386, %v2412, %v2416
      %v2418 = vrot.slane %v422, 2
      %v2419 = vrot.slane %v418, 3
      %v2420 = vor.u32 %v2418, %v2419
      %v2421 = vsel %vm2386, %v2416, %v2420
      %v2422 = vrot.slane %v430, 2
      %v2423 = vrot.slane %v426, 3
      %v2424 = vor.u32 %v2422, %v2423
      %v2425 = vsel %vm2386, %v2420, %v2424
      %v2426 = vrot.slane %v438, 2
      %v2427 = vrot.slane %v434, 3
      %v2428 = vor.u32 %v2426, %v2427
      %v2429 = vsel %vm2386, %v2424, %v2428
      %v2430 = vrot.slane %v446, 2
      %v2431 = vrot.slane %v442, 3
      %v2432 = vor.u32 %v2430, %v2431
      %v2433 = vsel %vm2386, %v2428, %v2432
      %v2434 = vrot.slane %v454, 2
      %v2435 = vrot.slane %v450, 3
      %v2436 = vor.u32 %v2434, %v2435
      %v2437 = vsel %vm2386, %v2432, %v2436
      %v2438 = vrot.slane %v462, 2
      %v2439 = vrot.slane %v458, 3
      %v2440 = vor.u32 %v2438, %v2439
      %v2441 = vsel %vm2386, %v2436, %v2440
      %v2442 = vrot.slane %v470, 2
      %v2443 = vrot.slane %v466, 3
      %v2444 = vor.u32 %v2442, %v2443
      %v2445 = vsel %vm2386, %v2440, %v2444
      %v2446 = vrot.slane %v478, 2
      %v2447 = vrot.slane %v474, 3
      %v2448 = vor.u32 %v2446, %v2447
      %v2449 = vsel %vm2386, %v2444, %v2448
      %v2450 = vrot.slane %v1553, 2
      %v2451 = vrot.slane %v1556, 3
      %v2452 = vor.u32 %v2450, %v2451
      %v2453 = vsel %vm2386, %v2448, %v2452
      %v2455 = vshrl.u32 %v2156, 16
      %v2457 = vrot.slane %v2455, 2
      %v2458 = vshll.u32 %v2156, 16
      %v2460 = vrot.slane %v2458, 3
      %v2461 = vor.u32 %v2457, %v2460
      %v2462 = vsel %vm2386, %v2452, %v2461
      %v2464 = vshrl.u32 %v2157, 16
      %v2466 = vrot.slane %v2464, 2
      %v2467 = vshll.u32 %v2157, 16
      %v2469 = vrot.slane %v2467, 3
      %v2470 = vor.u32 %v2466, %v2469
      %v2471 = vsel %vm2386, %v2461, %v2470
      %v2473 = vsel %vm486, %v2393, 0
      %v2476 = vsel %vm486, %v2397, 0
      %v2479 = vsel %vm486, %v2401, 0
      %v2482 = vsel %vm486, %v2405, 0
      %v2485 = vsel %vm486, %v2409, 0
      %v2488 = vsel %vm486, %v2413, 0
      %v2491 = vsel %vm486, %v2417, 0
      %v2494 = vsel %vm486, %v2421, 0
      %v2497 = vsel %vm486, %v2425, 0
      %v2500 = vsel %vm486, %v2429, 0
      %v2503 = vsel %vm486, %v2433, 0
      %v2506 = vsel %vm486, %v2437, 0
      %v2509 = vsel %vm486, %v2441, 0
      %v2512 = vsel %vm486, %v2445, 0
      %v2515 = vsel %vm486, %v2449, 0
      %v2518 = vsel %vm486, %v2453, 0
      %v2521 = vsel %vm486, %v2462, 0
      %v2524 = vsel %vm486, %v2471, 0
      %v2527 = vsel %vm541, %v2385, 0
      %2529 = vmatprep.subr.bf16.mxu0 0
      %2530 = vmatpush1.bf16.msra.mxu0 %v2527
      %2531 = vmatprep.subr.bf16.mxu0 0
      %2532 = vmatpush1.bf16.msra.mxu0 0
      %2533 = vmatprep.subr.bf16.mxu0 0
      %2534 = vmatpush1.bf16.msra.mxu0 0
      %2535 = vmatprep.subr.bf16.mxu0 0
      %2536 = vmatpush1.bf16.msra.mxu0 0
      %2537 = vmatprep.subr.bf16.mxu0 0
      %2538 = vmatpush1.bf16.msra.mxu0 0
      %2539 = vmatprep.subr.bf16.mxu0 0
      %2540 = vmatpush1.bf16.msra.mxu0 0
      %2541 = vmatprep.subr.bf16.mxu0 0
      %2542 = vmatpush1.bf16.msra.mxu0 0
      %2543 = vmatprep.subr.bf16.mxu0 0
      %2544 = vmatpush1.bf16.msra.mxu0 0
      %2545 = vmatprep.subr.bf16.mxu0 0
      %2546 = vmatpush1.bf16.msra.mxu0 0
      %2547 = vmatprep.subr.bf16.mxu0 0
      %2548 = vmatpush1.bf16.msra.mxu0 0
      %2549 = vmatprep.subr.bf16.mxu0 0
      %2550 = vmatpush1.bf16.msra.mxu0 0
      %2551 = vmatprep.subr.bf16.mxu0 0
      %2552 = vmatpush1.bf16.msra.mxu0 0
      %2553 = vmatprep.subr.bf16.mxu0 0
      %2554 = vmatpush1.bf16.msra.mxu0 0
      %2555 = vmatprep.subr.bf16.mxu0 0
      %2556 = vmatpush1.bf16.msra.mxu0 0
      %2557 = vmatprep.subr.bf16.mxu0 0
      %2558 = vmatpush1.bf16.msra.mxu0 0
      %2559 = vmatprep.subr.bf16.mxu0 0
      %2560 = vmatpush1.bf16.msra.mxu0 0
      %2561 = vmatprep.mubr.bf16.mxu0 0
      %2562 = vmatmul.mubr.bf16.gmra.mrb[0].mxu0 %v2473
      %v2563 = vpop.f32.mrb[0].mxu0
      %v2564 = vadd.f32 0.0, %v2563
      %v2565 = vpop.f32.mrb[0].mxu0
      %v2566 = vpop.f32.mrb[0].mxu0
      %v2567 = vadd.f32 0.0, %v2566
      %v2568 = vpop.f32.mrb[0].mxu0
      %2569 = vmatprep.mubr.bf16.mxu0 0
      %2570 = vmatmul.mubr.bf16.gmra.mrb[0].mxu0 %v2476
      %v2571 = vpop.f32.mrb[0].mxu0
      %v2572 = vadd.f32 0.0, %v2571
      %v2573 = vpop.f32.mrb[0].mxu0
      %v2574 = vpop.f32.mrb[0].mxu0
      %v2575 = vadd.f32 0.0, %v2574
      %v2576 = vpop.f32.mrb[0].mxu0
      %2577 = vmatprep.mubr.bf16.mxu0 0
      %2578 = vmatmul.mubr.bf16.gmra.mrb[0].mxu0 %v2479
      %v2579 = vpop.f32.mrb[0].mxu0
      %v2580 = vadd.f32 0.0, %v2579
      %v2581 = vpop.f32.mrb[0].mxu0
      %v2582 = vpop.f32.mrb[0].mxu0
      %v2583 = vadd.f32 0.0, %v2582
      %v2584 = vpop.f32.mrb[0].mxu0
      %2585 = vmatprep.mubr.bf16.mxu0 0
      %2586 = vmatmul.mubr.bf16.gmra.mrb[0].mxu0 %v2482
      %v2587 = vpop.f32.mrb[0].mxu0
      %v2588 = vadd.f32 0.0, %v2587
      %v2589 = vpop.f32.mrb[0].mxu0
      %v2590 = vpop.f32.mrb[0].mxu0
      %v2591 = vadd.f32 0.0, %v2590
      %v2592 = vpop.f32.mrb[0].mxu0
      %2593 = vmatprep.mubr.bf16.mxu0 0
      %2594 = vmatmul.mubr.bf16.gmra.mrb[0].mxu0 %v2485
      %v2595 = vpop.f32.mrb[0].mxu0
      %v2596 = vadd.f32 0.0, %v2595
      %v2597 = vpop.f32.mrb[0].mxu0
      %v2598 = vpop.f32.mrb[0].mxu0
      %v2599 = vadd.f32 0.0, %v2598
      %v2600 = vpop.f32.mrb[0].mxu0
      %2601 = vmatprep.mubr.bf16.mxu0 0
      %2602 = vmatmul.mubr.bf16.gmra.mrb[0].mxu0 %v2488
      %v2603 = vpop.f32.mrb[0].mxu0
      %v2604 = vadd.f32 0.0, %v2603
      %v2605 = vpop.f32.mrb[0].mxu0
      %v2606 = vpop.f32.mrb[0].mxu0
      %v2607 = vadd.f32 0.0, %v2606
      %v2608 = vpop.f32.mrb[0].mxu0
      %2609 = vmatprep.mubr.bf16.mxu0 0
      %2610 = vmatmul.mubr.bf16.gmra.mrb[0].mxu0 %v2491
      %v2611 = vpop.f32.mrb[0].mxu0
      %v2612 = vadd.f32 0.0, %v2611
      %v2613 = vpop.f32.mrb[0].mxu0
      %v2614 = vpop.f32.mrb[0].mxu0
      %v2615 = vadd.f32 0.0, %v2614
      %v2616 = vpop.f32.mrb[0].mxu0
      %2617 = vmatprep.mubr.bf16.mxu0 0
      %2618 = vmatmul.mubr.bf16.gmra.mrb[0].mxu0 %v2494
      %v2619 = vpop.f32.mrb[0].mxu0
      %v2620 = vadd.f32 0.0, %v2619
      %v2621 = vpop.f32.mrb[0].mxu0
      %v2622 = vpop.f32.mrb[0].mxu0
      %v2623 = vadd.f32 0.0, %v2622
      %v2624 = vpop.f32.mrb[0].mxu0
      %2625 = vmatprep.mubr.bf16.mxu0 0
      %2626 = vmatmul.mubr.bf16.gmra.mrb[0].mxu0 %v2497
      %v2627 = vpop.f32.mrb[0].mxu0
      %v2628 = vadd.f32 0.0, %v2627
      %v2629 = vpop.f32.mrb[0].mxu0
      %v2630 = vpop.f32.mrb[0].mxu0
      %v2631 = vadd.f32 0.0, %v2630
      %v2632 = vpop.f32.mrb[0].mxu0
      %2633 = vmatprep.mubr.bf16.mxu0 0
      %2634 = vmatmul.mubr.bf16.gmra.mrb[0].mxu0 %v2500
      %v2635 = vpop.f32.mrb[0].mxu0
      %v2636 = vadd.f32 0.0, %v2635
      %v2637 = vpop.f32.mrb[0].mxu0
      %v2638 = vpop.f32.mrb[0].mxu0
      %v2639 = vadd.f32 0.0, %v2638
      %v2640 = vpop.f32.mrb[0].mxu0
      %2641 = vmatprep.mubr.bf16.mxu0 0
      %2642 = vmatmul.mubr.bf16.gmra.mrb[0].mxu0 %v2503
      %v2643 = vpop.f32.mrb[0].mxu0
      %v2644 = vadd.f32 0.0, %v2643
      %v2645 = vpop.f32.mrb[0].mxu0
      %v2646 = vpop.f32.mrb[0].mxu0
      %v2647 = vadd.f32 0.0, %v2646
      %v2648 = vpop.f32.mrb[0].mxu0
      %2649 = vmatprep.mubr.bf16.mxu0 0
      %2650 = vmatmul.mubr.bf16.gmra.mrb[0].mxu0 %v2506
      %v2651 = vpop.f32.mrb[0].mxu0
      %v2652 = vadd.f32 0.0, %v2651
      %v2653 = vpop.f32.mrb[0].mxu0
      %v2654 = vpop.f32.mrb[0].mxu0
      %v2655 = vadd.f32 0.0, %v2654
      %v2656 = vpop.f32.mrb[0].mxu0
      %2657 = vmatprep.mubr.bf16.mxu0 0
      %2658 = vmatmul.mubr.bf16.gmra.mrb[0].mxu0 %v2509
      %v2659 = vpop.f32.mrb[0].mxu0
      %v2660 = vadd.f32 0.0, %v2659
      %v2661 = vpop.f32.mrb[0].mxu0
      %v2662 = vpop.f32.mrb[0].mxu0
      %v2663 = vadd.f32 0.0, %v2662
      %v2664 = vpop.f32.mrb[0].mxu0
      %2665 = vmatprep.mubr.bf16.mxu0 0
      %2666 = vmatmul.mubr.bf16.gmra.mrb[0].mxu0 %v2512
      %v2667 = vpop.f32.mrb[0].mxu0
      %v2668 = vadd.f32 0.0, %v2667
      %v2669 = vpop.f32.mrb[0].mxu0
      %v2670 = vpop.f32.mrb[0].mxu0
      %v2671 = vadd.f32 0.0, %v2670
      %v2672 = vpop.f32.mrb[0].mxu0
      %2673 = vmatprep.mubr.bf16.mxu0 0
      %2674 = vmatmul.mubr.bf16.gmra.mrb[0].mxu0 %v2515
      %v2675 = vpop.f32.mrb[0].mxu0
      %v2676 = vadd.f32 0.0, %v2675
      %v2677 = vpop.f32.mrb[0].mxu0
      %v2678 = vpop.f32.mrb[0].mxu0
      %v2679 = vadd.f32 0.0, %v2678
      %v2680 = vpop.f32.mrb[0].mxu0
      %2681 = vmatprep.mubr.bf16.mxu0 0
      %2682 = vmatmul.mubr.bf16.gmra.mrb[0].mxu0 %v2518
      %v2683 = vpop.f32.mrb[0].mxu0
      %v2684 = vadd.f32 0.0, %v2683
      %v2685 = vpop.f32.mrb[0].mxu0
      %v2686 = vpop.f32.mrb[0].mxu0
      %v2687 = vadd.f32 0.0, %v2686
      %v2688 = vpop.f32.mrb[0].mxu0
      %2689 = vmatprep.mubr.bf16.mxu0 0
      %2690 = vmatmul.mubr.bf16.gmra.mrb[0].mxu0 %v2521
      %v2691 = vpop.f32.mrb[0].mxu0
      %v2692 = vadd.f32 0.0, %v2691
      %v2693 = vpop.f32.mrb[0].mxu0
      %v2694 = vpop.f32.mrb[0].mxu0
      %v2695 = vadd.f32 0.0, %v2694
      %v2696 = vpop.f32.mrb[0].mxu0
      %2697 = vmatprep.mubr.bf16.mxu0 0
      %2698 = vmatmul.mubr.bf16.gmra.mrb[0].mxu0 %v2524
      %v2699 = vpop.f32.mrb[0].mxu0
      %v2700 = vadd.f32 0.0, %v2699
      %v2701 = vpop.f32.mrb[0].mxu0
      %v2702 = vpop.f32.mrb[0].mxu0
      %v2703 = vadd.f32 0.0, %v2702
      %v2704 = vpop.f32.mrb[0].mxu0
      %2705 = vdwg.mxu0
      %v2706 = vadd.f32 %v2348, %v2564
      %v2707 = vadd.f32 %v2349, %v2567
      %v2708 = vadd.f32 %v2350, %v2572
      %v2709 = vadd.f32 %v2351, %v2575
      %v2710 = vadd.f32 %v2352, %v2580
      %v2711 = vadd.f32 %v2353, %v2583
      %v2712 = vadd.f32 %v2354, %v2588
      %v2713 = vadd.f32 %v2355, %v2591
      %v2714 = vadd.f32 %v2356, %v2596
      %v2715 = vadd.f32 %v2357, %v2599
      %v2716 = vadd.f32 %v2358, %v2604
      %v2717 = vadd.f32 %v2359, %v2607
      %v2718 = vadd.f32 %v2360, %v2612
      %v2719 = vadd.f32 %v2361, %v2615
      %v2720 = vadd.f32 %v2362, %v2620
      %v2721 = vadd.f32 %v2363, %v2623
      %v2722 = vadd.f32 %v2364, %v2628
      %v2723 = vadd.f32 %v2365, %v2631
      %v2724 = vadd.f32 %v2366, %v2636
      %v2725 = vadd.f32 %v2367, %v2639
      %v2726 = vadd.f32 %v2368, %v2644
      %v2727 = vadd.f32 %v2369, %v2647
      %v2728 = vadd.f32 %v2370, %v2652
      %v2729 = vadd.f32 %v2371, %v2655
      %v2730 = vadd.f32 %v2372, %v2660
      %v2731 = vadd.f32 %v2373, %v2663
      %v2732 = vadd.f32 %v2374, %v2668
      %v2733 = vadd.f32 %v2375, %v2671
      %v2734 = vadd.f32 %v2376, %v2676
      %v2735 = vadd.f32 %v2377, %v2679
      %v2736 = vadd.f32 %v2378, %v2684
      %v2737 = vadd.f32 %v2379, %v2687
      %v2738 = vadd.f32 %v2380, %v2692
      %v2739 = vadd.f32 %v2381, %v2695
      %v2740 = vadd.f32 %v2382, %v2700
      %v2741 = vadd.f32 %v2383, %v2703
      %s2742 = scalar_lea.vmem %s1, 16
      %v2743 = vld [vmem:[%s2742] sm:$0x3]
      %vm2744 = vcmask 1044480
      %v2745 = vrot.slane %v320, 3
      %v2746 = vrot.slane %v321, 3
      %v2747 = vsel %vm2744, %v2745, %v2746
      %v2748 = vrot.slane %v322, 3
      %v2749 = vsel %vm2744, %v2746, %v2748
      %v2750 = vrot.slane %v323, 3
      %v2751 = vsel %vm2744, %v2748, %v2750
      %v2752 = vrot.slane %v324, 3
      %v2753 = vsel %vm2744, %v2750, %v2752
      %v2754 = vrot.slane %v325, 3
      %v2755 = vsel %vm2744, %v2752, %v2754
      %v2756 = vrot.slane %v326, 3
      %v2757 = vsel %vm2744, %v2754, %v2756
      %v2758 = vrot.slane %v327, 3
      %v2759 = vsel %vm2744, %v2756, %v2758
      %v2760 = vrot.slane %v328, 3
      %v2761 = vsel %vm2744, %v2758, %v2760
      %v2762 = vrot.slane %v329, 3
      %v2763 = vsel %vm2744, %v2760, %v2762
      %v2764 = vrot.slane %v330, 3
      %v2765 = vsel %vm2744, %v2762, %v2764
      %v2766 = vrot.slane %v331, 3
      %v2767 = vsel %vm2744, %v2764, %v2766
      %v2768 = vrot.slane %v332, 3
      %v2769 = vsel %vm2744, %v2766, %v2768
      %v2770 = vrot.slane %v333, 3
      %v2771 = vsel %vm2744, %v2768, %v2770
      %v2772 = vrot.slane %v334, 3
      %v2773 = vsel %vm2744, %v2770, %v2772
      %v2774 = vrot.slane %v335, 3
      %v2775 = vsel %vm2744, %v2772, %v2774
      %v2776 = vrot.slane %v1254, 3
      %v2777 = vsel %vm2744, %v2774, %v2776
      %v2778 = vrot.slane %v2156, 3
      %v2779 = vsel %vm2744, %v2776, %v2778
      %v2780 = vrot.slane %v2157, 3
      %v2781 = vsel %vm2744, %v2778, %v2780
      %v2783 = vsel %vm486, %v2747, 0
      %v2786 = vsel %vm486, %v2749, 0
      %v2789 = vsel %vm486, %v2751, 0
      %v2792 = vsel %vm486, %v2753, 0
      %v2795 = vsel %vm486, %v2755, 0
      %v2798 = vsel %vm486, %v2757, 0
      %v2801 = vsel %vm486, %v2759, 0
      %v2804 = vsel %vm486, %v2761, 0
      %v2807 = vsel %vm486, %v2763, 0
      %v2810 = vsel %vm486, %v2765, 0
      %v2813 = vsel %vm486, %v2767, 0
      %v2816 = vsel %vm486, %v2769, 0
      %v2819 = vsel %vm486, %v2771, 0
      %v2822 = vsel %vm486, %v2773, 0
      %v2825 = vsel %vm486, %v2775, 0
      %v2828 = vsel %vm486, %v2777, 0
      %v2831 = vsel %vm486, %v2779, 0
      %v2834 = vsel %vm486, %v2781, 0
      %v2837 = vsel %vm541, %v2743, 0
      %2839 = vmatprep.subr.bf16.mxu0 0
      %2840 = vmatpush1.bf16.msra.mxu0 %v2837
      %2841 = vmatprep.subr.bf16.mxu0 0
      %2842 = vmatpush1.bf16.msra.mxu0 0
      %2843 = vmatprep.subr.bf16.mxu0 0
      %2844 = vmatpush1.bf16.msra.mxu0 0
      %2845 = vmatprep.subr.bf16.mxu0 0
      %2846 = vmatpush1.bf16.msra.mxu0 0
      %2847 = vmatprep.subr.bf16.mxu0 0
      %2848 = vmatpush1.bf16.msra.mxu0 0
      %2849 = vmatprep.subr.bf16.mxu0 0
      %2850 = vmatpush1.bf16.msra.mxu0 0
      %2851 = vmatprep.subr.bf16.mxu0 0
      %2852 = vmatpush1.bf16.msra.mxu0 0
      %2853 = vmatprep.subr.bf16.mxu0 0
      %2854 = vmatpush1.bf16.msra.mxu0 0
      %2855 = vmatprep.subr.bf16.mxu0 0
      %2856 = vmatpush1.bf16.msra.mxu0 0
      %2857 = vmatprep.subr.bf16.mxu0 0
      %2858 = vmatpush1.bf16.msra.mxu0 0
      %2859 = vmatprep.subr.bf16.mxu0 0
      %2860 = vmatpush1.bf16.msra.mxu0 0
      %2861 = vmatprep.subr.bf16.mxu0 0
      %2862 = vmatpush1.bf16.msra.mxu0 0
      %2863 = vmatprep.subr.bf16.mxu0 0
      %2864 = vmatpush1.bf16.msra.mxu0 0
      %2865 = vmatprep.subr.bf16.mxu0 0
      %2866 = vmatpush1.bf16.msra.mxu0 0
      %2867 = vmatprep.subr.bf16.mxu0 0
      %2868 = vmatpush1.bf16.msra.mxu0 0
      %2869 = vmatprep.subr.bf16.mxu0 0
      %2870 = vmatpush1.bf16.msra.mxu0 0
      %2871 = vmatprep.mubr.bf16.mxu0 0
      %2872 = vmatmul.mubr.bf16.gmra.mrb[0].mxu0 %v2783
      %v2873 = vpop.f32.mrb[0].mxu0
      %v2874 = vadd.f32 0.0, %v2873
      %v2875 = vpop.f32.mrb[0].mxu0
      %v2876 = vpop.f32.mrb[0].mxu0
      %v2877 = vadd.f32 0.0, %v2876
      %v2878 = vpop.f32.mrb[0].mxu0
      %2879 = vmatprep.mubr.bf16.mxu0 0
      %2880 = vmatmul.mubr.bf16.gmra.mrb[0].mxu0 %v2786
      %v2881 = vpop.f32.mrb[0].mxu0
      %v2882 = vadd.f32 0.0, %v2881
      %v2883 = vpop.f32.mrb[0].mxu0
      %v2884 = vpop.f32.mrb[0].mxu0
      %v2885 = vadd.f32 0.0, %v2884
      %v2886 = vpop.f32.mrb[0].mxu0
      %2887 = vmatprep.mubr.bf16.mxu0 0
      %2888 = vmatmul.mubr.bf16.gmra.mrb[0].mxu0 %v2789
      %v2889 = vpop.f32.mrb[0].mxu0
      %v2890 = vadd.f32 0.0, %v2889
      %v2891 = vpop.f32.mrb[0].mxu0
      %v2892 = vpop.f32.mrb[0].mxu0
      %v2893 = vadd.f32 0.0, %v2892
      %v2894 = vpop.f32.mrb[0].mxu0
      %2895 = vmatprep.mubr.bf16.mxu0 0
      %2896 = vmatmul.mubr.bf16.gmra.mrb[0].mxu0 %v2792
      %v2897 = vpop.f32.mrb[0].mxu0
      %v2898 = vadd.f32 0.0, %v2897
      %v2899 = vpop.f32.mrb[0].mxu0
      %v2900 = vpop.f32.mrb[0].mxu0
      %v2901 = vadd.f32 0.0, %v2900
      %v2902 = vpop.f32.mrb[0].mxu0
      %2903 = vmatprep.mubr.bf16.mxu0 0
      %2904 = vmatmul.mubr.bf16.gmra.mrb[0].mxu0 %v2795
      %v2905 = vpop.f32.mrb[0].mxu0
      %v2906 = vadd.f32 0.0, %v2905
      %v2907 = vpop.f32.mrb[0].mxu0
      %v2908 = vpop.f32.mrb[0].mxu0
      %v2909 = vadd.f32 0.0, %v2908
      %v2910 = vpop.f32.mrb[0].mxu0
      %2911 = vmatprep.mubr.bf16.mxu0 0
      %2912 = vmatmul.mubr.bf16.gmra.mrb[0].mxu0 %v2798
      %v2913 = vpop.f32.mrb[0].mxu0
      %v2914 = vadd.f32 0.0, %v2913
      %v2915 = vpop.f32.mrb[0].mxu0
      %v2916 = vpop.f32.mrb[0].mxu0
      %v2917 = vadd.f32 0.0, %v2916
      %v2918 = vpop.f32.mrb[0].mxu0
      %2919 = vmatprep.mubr.bf16.mxu0 0
      %2920 = vmatmul.mubr.bf16.gmra.mrb[0].mxu0 %v2801
      %v2921 = vpop.f32.mrb[0].mxu0
      %v2922 = vadd.f32 0.0, %v2921
      %v2923 = vpop.f32.mrb[0].mxu0
      %v2924 = vpop.f32.mrb[0].mxu0
      %v2925 = vadd.f32 0.0, %v2924
      %v2926 = vpop.f32.mrb[0].mxu0
      %2927 = vmatprep.mubr.bf16.mxu0 0
      %2928 = vmatmul.mubr.bf16.gmra.mrb[0].mxu0 %v2804
      %v2929 = vpop.f32.mrb[0].mxu0
      %v2930 = vadd.f32 0.0, %v2929
      %v2931 = vpop.f32.mrb[0].mxu0
      %v2932 = vpop.f32.mrb[0].mxu0
      %v2933 = vadd.f32 0.0, %v2932
      %v2934 = vpop.f32.mrb[0].mxu0
      %2935 = vmatprep.mubr.bf16.mxu0 0
      %2936 = vmatmul.mubr.bf16.gmra.mrb[0].mxu0 %v2807
      %v2937 = vpop.f32.mrb[0].mxu0
      %v2938 = vadd.f32 0.0, %v2937
      %v2939 = vpop.f32.mrb[0].mxu0
      %v2940 = vpop.f32.mrb[0].mxu0
      %v2941 = vadd.f32 0.0, %v2940
      %v2942 = vpop.f32.mrb[0].mxu0
      %2943 = vmatprep.mubr.bf16.mxu0 0
      %2944 = vmatmul.mubr.bf16.gmra.mrb[0].mxu0 %v2810
      %v2945 = vpop.f32.mrb[0].mxu0
      %v2946 = vadd.f32 0.0, %v2945
      %v2947 = vpop.f32.mrb[0].mxu0
      %v2948 = vpop.f32.mrb[0].mxu0
      %v2949 = vadd.f32 0.0, %v2948
      %v2950 = vpop.f32.mrb[0].mxu0
      %2951 = vmatprep.mubr.bf16.mxu0 0
      %2952 = vmatmul.mubr.bf16.gmra.mrb[0].mxu0 %v2813
      %v2953 = vpop.f32.mrb[0].mxu0
      %v2954 = vadd.f32 0.0, %v2953
      %v2955 = vpop.f32.mrb[0].mxu0
      %v2956 = vpop.f32.mrb[0].mxu0
      %v2957 = vadd.f32 0.0, %v2956
      %v2958 = vpop.f32.mrb[0].mxu0
      %2959 = vmatprep.mubr.bf16.mxu0 0
      %2960 = vmatmul.mubr.bf16.gmra.mrb[0].mxu0 %v2816
      %v2961 = vpop.f32.mrb[0].mxu0
      %v2962 = vadd.f32 0.0, %v2961
      %v2963 = vpop.f32.mrb[0].mxu0
      %v2964 = vpop.f32.mrb[0].mxu0
      %v2965 = vadd.f32 0.0, %v2964
      %v2966 = vpop.f32.mrb[0].mxu0
      %2967 = vmatprep.mubr.bf16.mxu0 0
      %2968 = vmatmul.mubr.bf16.gmra.mrb[0].mxu0 %v2819
      %v2969 = vpop.f32.mrb[0].mxu0
      %v2970 = vadd.f32 0.0, %v2969
      %v2971 = vpop.f32.mrb[0].mxu0
      %v2972 = vpop.f32.mrb[0].mxu0
      %v2973 = vadd.f32 0.0, %v2972
      %v2974 = vpop.f32.mrb[0].mxu0
      %2975 = vmatprep.mubr.bf16.mxu0 0
      %2976 = vmatmul.mubr.bf16.gmra.mrb[0].mxu0 %v2822
      %v2977 = vpop.f32.mrb[0].mxu0
      %v2978 = vadd.f32 0.0, %v2977
      %v2979 = vpop.f32.mrb[0].mxu0
      %v2980 = vpop.f32.mrb[0].mxu0
      %v2981 = vadd.f32 0.0, %v2980
      %v2982 = vpop.f32.mrb[0].mxu0
      %2983 = vmatprep.mubr.bf16.mxu0 0
      %2984 = vmatmul.mubr.bf16.gmra.mrb[0].mxu0 %v2825
      %v2985 = vpop.f32.mrb[0].mxu0
      %v2986 = vadd.f32 0.0, %v2985
      %v2987 = vpop.f32.mrb[0].mxu0
      %v2988 = vpop.f32.mrb[0].mxu0
      %v2989 = vadd.f32 0.0, %v2988
      %v2990 = vpop.f32.mrb[0].mxu0
      %2991 = vmatprep.mubr.bf16.mxu0 0
      %2992 = vmatmul.mubr.bf16.gmra.mrb[0].mxu0 %v2828
      %v2993 = vpop.f32.mrb[0].mxu0
      %v2994 = vadd.f32 0.0, %v2993
      %v2995 = vpop.f32.mrb[0].mxu0
      %v2996 = vpop.f32.mrb[0].mxu0
      %v2997 = vadd.f32 0.0, %v2996
      %v2998 = vpop.f32.mrb[0].mxu0
      %2999 = vmatprep.mubr.bf16.mxu0 0
      %3000 = vmatmul.mubr.bf16.gmra.mrb[0].mxu0 %v2831
      %v3001 = vpop.f32.mrb[0].mxu0
      %v3002 = vadd.f32 0.0, %v3001
      %v3003 = vpop.f32.mrb[0].mxu0
      %v3004 = vpop.f32.mrb[0].mxu0
      %v3005 = vadd.f32 0.0, %v3004
      %v3006 = vpop.f32.mrb[0].mxu0
      %3007 = vmatprep.mubr.bf16.mxu0 0
      %3008 = vmatmul.mubr.bf16.gmra.mrb[0].mxu0 %v2834
      %v3009 = vpop.f32.mrb[0].mxu0
      %v3010 = vadd.f32 0.0, %v3009
      %v3011 = vpop.f32.mrb[0].mxu0
      %v3012 = vpop.f32.mrb[0].mxu0
      %v3013 = vadd.f32 0.0, %v3012
      %v3014 = vpop.f32.mrb[0].mxu0
      %3015 = vdwg.mxu0
      %v3016 = vadd.f32 %v2706, %v2874
      %v3017 = vadd.f32 %v2707, %v2877
      %v3018 = vadd.f32 %v2708, %v2882
      %v3019 = vadd.f32 %v2709, %v2885
      %v3020 = vadd.f32 %v2710, %v2890
      %v3021 = vadd.f32 %v2711, %v2893
      %v3022 = vadd.f32 %v2712, %v2898
      %v3023 = vadd.f32 %v2713, %v2901
      %v3024 = vadd.f32 %v2714, %v2906
      %v3025 = vadd.f32 %v2715, %v2909
      %v3026 = vadd.f32 %v2716, %v2914
      %v3027 = vadd.f32 %v2717, %v2917
      %v3028 = vadd.f32 %v2718, %v2922
      %v3029 = vadd.f32 %v2719, %v2925
      %v3030 = vadd.f32 %v2720, %v2930
      %v3031 = vadd.f32 %v2721, %v2933
      %v3032 = vadd.f32 %v2722, %v2938
      %v3033 = vadd.f32 %v2723, %v2941
      %v3034 = vadd.f32 %v2724, %v2946
      %v3035 = vadd.f32 %v2725, %v2949
      %v3036 = vadd.f32 %v2726, %v2954
      %v3037 = vadd.f32 %v2727, %v2957
      %v3038 = vadd.f32 %v2728, %v2962
      %v3039 = vadd.f32 %v2729, %v2965
      %v3040 = vadd.f32 %v2730, %v2970
      %v3041 = vadd.f32 %v2731, %v2973
      %v3042 = vadd.f32 %v2732, %v2978
      %v3043 = vadd.f32 %v2733, %v2981
      %v3044 = vadd.f32 %v2734, %v2986
      %v3045 = vadd.f32 %v2735, %v2989
      %v3046 = vadd.f32 %v2736, %v2994
      %v3047 = vadd.f32 %v2737, %v2997
      %v3048 = vadd.f32 %v2738, %v3002
      %v3049 = vadd.f32 %v2739, %v3005
      %v3050 = vadd.f32 %v2740, %v3010
      %v3051 = vadd.f32 %v2741, %v3013
      %v3052 = vld [vmem:[%s2] sm:$0x1]
      %v3054 = vlaneseq
      %v3055 = vshrl.u32 %v3054, 7
      %v3056 = vsub.s32 0, %v3055
      %v3057 = vrot.slane %v3052, %v3056
      %v3059 = vadd.f32 %v3016, %v3057
      %v3060 = vadd.f32 %v3017, %v3057
      %v3061 = vadd.f32 %v3018, %v3057
      %v3062 = vadd.f32 %v3019, %v3057
      %v3063 = vadd.f32 %v3020, %v3057
      %v3064 = vadd.f32 %v3021, %v3057
      %v3065 = vadd.f32 %v3022, %v3057
      %v3066 = vadd.f32 %v3023, %v3057
      %v3067 = vadd.f32 %v3024, %v3057
      %v3068 = vadd.f32 %v3025, %v3057
      %v3069 = vadd.f32 %v3026, %v3057
      %v3070 = vadd.f32 %v3027, %v3057
      %v3071 = vadd.f32 %v3028, %v3057
      %v3072 = vadd.f32 %v3029, %v3057
      %v3073 = vadd.f32 %v3030, %v3057
      %v3074 = vadd.f32 %v3031, %v3057
      %v3075 = vadd.f32 %v3032, %v3057
      %v3076 = vadd.f32 %v3033, %v3057
      %v3077 = vadd.f32 %v3034, %v3057
      %v3078 = vadd.f32 %v3035, %v3057
      %v3079 = vadd.f32 %v3036, %v3057
      %v3080 = vadd.f32 %v3037, %v3057
      %v3081 = vadd.f32 %v3038, %v3057
      %v3082 = vadd.f32 %v3039, %v3057
      %v3083 = vadd.f32 %v3040, %v3057
      %v3084 = vadd.f32 %v3041, %v3057
      %v3085 = vadd.f32 %v3042, %v3057
      %v3086 = vadd.f32 %v3043, %v3057
      %v3087 = vadd.f32 %v3044, %v3057
      %v3088 = vadd.f32 %v3045, %v3057
      %v3089 = vadd.f32 %v3046, %v3057
      %v3090 = vadd.f32 %v3047, %v3057
      %v3091 = vadd.f32 %v3048, %v3057
      %v3092 = vadd.f32 %v3049, %v3057
      %v3093 = vadd.f32 %v3050, %v3057
      %v3094 = vadd.f32 %v3051, %v3057
      %v3095 = vmax.f32 %v3059, 0.0
      %v3096 = vmax.f32 %v3060, 0.0
      %v3097 = vmax.f32 %v3061, 0.0
      %v3098 = vmax.f32 %v3062, 0.0
      %v3099 = vmax.f32 %v3063, 0.0
      %v3100 = vmax.f32 %v3064, 0.0
      %v3101 = vmax.f32 %v3065, 0.0
      %v3102 = vmax.f32 %v3066, 0.0
      %v3103 = vmax.f32 %v3067, 0.0
      %v3104 = vmax.f32 %v3068, 0.0
      %v3105 = vmax.f32 %v3069, 0.0
      %v3106 = vmax.f32 %v3070, 0.0
      %v3107 = vmax.f32 %v3071, 0.0
      %v3108 = vmax.f32 %v3072, 0.0
      %v3109 = vmax.f32 %v3073, 0.0
      %v3110 = vmax.f32 %v3074, 0.0
      %v3111 = vmax.f32 %v3075, 0.0
      %v3112 = vmax.f32 %v3076, 0.0
      %v3113 = vmax.f32 %v3077, 0.0
      %v3114 = vmax.f32 %v3078, 0.0
      %v3115 = vmax.f32 %v3079, 0.0
      %v3116 = vmax.f32 %v3080, 0.0
      %v3117 = vmax.f32 %v3081, 0.0
      %v3118 = vmax.f32 %v3082, 0.0
      %v3119 = vmax.f32 %v3083, 0.0
      %v3120 = vmax.f32 %v3084, 0.0
      %v3121 = vmax.f32 %v3085, 0.0
      %v3122 = vmax.f32 %v3086, 0.0
      %v3123 = vmax.f32 %v3087, 0.0
      %v3124 = vmax.f32 %v3088, 0.0
      %v3125 = vmax.f32 %v3089, 0.0
      %v3126 = vmax.f32 %v3090, 0.0
      %v3127 = vmax.f32 %v3091, 0.0
      %v3128 = vmax.f32 %v3092, 0.0
      %v3129 = vmax.f32 %v3093, 0.0
      %v3130 = vmax.f32 %v3094, 0.0
      %3131 = vst [vmem:[%s192] sm:$0xff] %v3095
      %3132 = vst [vmem:[%s192 + $0x8] sm:$0xff] %v3096
      %3133 = vst [vmem:[%s192 + $0x10] sm:$0xff] %v3097
      %3134 = vst [vmem:[%s192 + $0x18] sm:$0xff] %v3098
      %3135 = vst [vmem:[%s192 + $0x20] sm:$0xff] %v3099
      %3136 = vst [vmem:[%s192 + $0x28] sm:$0xff] %v3100
      %3137 = vst [vmem:[%s192 + $0x30] sm:$0xff] %v3101
      %3138 = vst [vmem:[%s192 + $0x38] sm:$0xff] %v3102
      %3139 = vst [vmem:[%s192 + $0x40] sm:$0xff] %v3103
      %3140 = vst [vmem:[%s192 + $0x48] sm:$0xff] %v3104
      %3141 = vst [vmem:[%s192 + $0x50] sm:$0xff] %v3105
      %3142 = vst [vmem:[%s192 + $0x58] sm:$0xff] %v3106
      %3143 = vst [vmem:[%s192 + $0x60] sm:$0xff] %v3107
      %3144 = vst [vmem:[%s192 + $0x68] sm:$0xff] %v3108
      %3145 = vst [vmem:[%s192 + $0x70] sm:$0xff] %v3109
      %3146 = vst [vmem:[%s192 + $0x78] sm:$0xff] %v3110
      %3147 = vst [vmem:[%s192 + $0x80] sm:$0xff] %v3111
      %3148 = vst [vmem:[%s192 + $0x88] sm:$0xff] %v3112
      %3149 = vst [vmem:[%s192 + $0x90] sm:$0xff] %v3113
      %3150 = vst [vmem:[%s192 + $0x98] sm:$0xff] %v3114
      %3151 = vst [vmem:[%s192 + $0xa0] sm:$0xff] %v3115
      %3152 = vst [vmem:[%s192 + $0xa8] sm:$0xff] %v3116
      %3153 = vst [vmem:[%s192 + $0xb0] sm:$0xff] %v3117
      %3154 = vst [vmem:[%s192 + $0xb8] sm:$0xff] %v3118
      %3155 = vst [vmem:[%s192 + $0xc0] sm:$0xff] %v3119
      %3156 = vst [vmem:[%s192 + $0xc8] sm:$0xff] %v3120
      %3157 = vst [vmem:[%s192 + $0xd0] sm:$0xff] %v3121
      %3158 = vst [vmem:[%s192 + $0xd8] sm:$0xff] %v3122
      %3159 = vst [vmem:[%s192 + $0xe0] sm:$0xff] %v3123
      %3160 = vst [vmem:[%s192 + $0xe8] sm:$0xff] %v3124
      %3161 = vst [vmem:[%s192 + $0xf0] sm:$0xff] %v3125
      %3162 = vst [vmem:[%s192 + $0xf8] sm:$0xff] %v3126
      %3163 = vst [vmem:[%s192 + $0x100] sm:$0xff] %v3127
      %3164 = vst [vmem:[%s192 + $0x108] sm:$0xff] %v3128
      %3165 = vst [vmem:[%s192 + $0x110] sm:$0xff] %v3129
      %3166 = vst [vmem:[%s192 + $0x118] sm:$0xff] %v3130
      %s3167 = smul.u32 36, %s19
      %p3168 = scmp.lt.s32.totalorder %s18, 1
      %s3169 = scalar_select %p3168, %s18, 1
      %p3170 = scmp.lt.s32.totalorder %s3167, 35
      %s3171 = scalar_select %p3170, %s3167, 35
      %s3172 = smul.addr %s3169, 36
      %s3173 = sadd.s32 %s3171, %s3172
      %s3174 = smul.addr %s3173, 8
      %s3175 = scalar_lea.vmem %s3, %s3174
      // Predicated region
      $region33: #{basic_conv2d.1} parent=31 // pred_check
        %p3176 = pneg %p114
      $region34: #{basic_conv2d.1} parent=31 // pred_check_branch
        %3178 = sbr.rel (%p3176) target = $region36
      $region35: #{basic_conv2d.1} parent=31 // pred_region
        %s3179 = smul.u32 36, %s19
      $region36: #{basic_conv2d.1} parent=31 // pred_fallthru
        _
    $region32: #{basic_conv2d.1} parent=5 // pred_fallthru
      _
    %p3180 = scmp.le.s32.totalorder 2, %s9
    // Predicated region
    $region37: #{basic_conv2d.1} parent=5 // pred_check
      %p3181 = pneg %p3180
    $region38: #{basic_conv2d.1} parent=5 // pred_check_branch
      %3183 = sbr.rel (%p3181) target = $region40
    $region39: #{basic_conv2d.1} parent=5 // pred_region
      %s3184 = ssub.s32 %s9, 2
      // Predicated region
      $region41: #{basic_conv2d.1} parent=39 // pred_check
        %p3185 = pneg %p120
      $region42: #{basic_conv2d.1} parent=39 // pred_check_branch
        %3187 = sbr.rel (%p3185) target = $region44
      $region43: #{basic_conv2d.1} parent=39 // pred_region
        %s3188 = smul.u32 36, %s21
        %p3189 = scmp.lt.s32.totalorder %s20, 1
        %s3190 = scalar_select %p3189, %s20, 1
        %p3191 = scmp.lt.s32.totalorder %s3188, 35
        %s3192 = scalar_select %p3191, %s3188, 35
        %s3193 = smul.addr %s3190, 36
        %s3194 = sadd.s32 %s3192, %s3193
        %s3195 = smul.addr %s3194, 8
        %s3196 = scalar_lea.vmem %s3, %s3195
      $region44: #{basic_conv2d.1} parent=39 // pred_fallthru
        _
    $region40: #{basic_conv2d.1} parent=5 // pred_fallthru
      _
  $region6: #{basic_conv2d.1} parent=0 // loop_footer
    %s13 = sadd.s32 1, %s9
  $region7: #{basic_conv2d.1} parent=0 // loop_footer_branch
    %8 = sbr.rel target = $region3
  $region8: #{basic_conv2d.1} parent=0 // loop_exit
    _

</llo_original>
